<compile_context>
chip_gen: v6e
topology: v6e:2x2x1
jax: 0.10.0
libtpu: 0.0.40
codegen_flags: <defaults>
</compile_context>

<pallas_src>
import functools

import jax
import jax.numpy as jnp
from jax import lax
from jax.experimental import pallas as pl
from jax.experimental.pallas import tpu as pltpu


# ----------------------------- Pallas kernel ------------------------------ #
def _complex_conv_kernel(w_ref, b_ref, x_ref, o_ref, patches_ref, *,
                         C, OC2, kh, kw, sh, sw, ph, pw, H, W, H_out, W_out):
    """Fused pad + im2col + MXU contraction for one batch image.

    w_ref       : VMEM (OC2, K)     combined complex weight, K = kh*kw*C (tap-major)
    b_ref       : VMEM (OC2, 1)     combined bias
    x_ref       : VMEM (1, C, H, W) un-padded input image
    o_ref       : VMEM (1, OC2, S)  lane-dense output, S = H_out*W_out
    patches_ref : VMEM (K, S)       im2col scratch (spatial flattened onto lanes)
    """
    del sw  # width stride == 1 (asserted in the wrapper)

    # Zero the im2col scratch.  Columns / rows that never receive a copy below
    # are exactly the zero-padding taps, so H/W padding is fully folded into
    # the kernel and no padded copy of the input ever exists in HBM or VMEM.
    patches_ref[...] = jnp.zeros(patches_ref.shape, patches_ref.dtype)

    # im2col: for every kernel tap (dh, dw), copy the valid part of each output
    # row's receptive field into the lane-dense patches matrix.  All offsets
    # are Python ints -> static contiguous slices only (no strided ref reads).
    # Each statement is a tiny load->store, so live ranges stay at one slab.
    for dh in range(kh):
        for dw in range(kw):
            k0 = (dh * kw + dw) * C                   # tap-major row block
            src_c0 = max(dw - pw, 0)                  # first valid input col
            src_c1 = min(dw - pw + W_out, W)          # one past last valid col
            if src_c1 <= src_c0:
                continue
            dst_c0 = src_c0 - (dw - pw)               # offset inside W_out window
            ncol = src_c1 - src_c0
            for i in range(H_out):
                a = sh * i + dh - ph                  # un-padded input row
                if 0 <= a < H:
                    col = i * W_out + dst_c0
                    patches_ref[k0:k0 + C, col:col + ncol] = (
                        x_ref[0, :, a, src_c0:src_c1])

    # Single MXU contraction: (OC2, K) @ (K, S).  The flattened spatial axis S
    # sits on the MXU's N / lane dimension -> lane-dense compute and stores.
    acc = jnp.dot(w_ref[...], patches_ref[...],
                  preferred_element_type=jnp.float32)
    o_ref[...] = (acc + b_ref[...])[None, :, :].astype(o_ref.dtype)


def _pallas_complex_conv(x, w2d, b2d, *, C, OC2, kh, kw, sh, sw, ph, pw,
                         H_out, W_out):
    N, _, H, W = x.shape
    K = kh * kw * C
    S = H_out * W_out

    kernel = functools.partial(
        _complex_conv_kernel, C=C, OC2=OC2, kh=kh, kw=kw, sh=sh, sw=sw,
        ph=ph, pw=pw, H=H, W=W, H_out=H_out, W_out=W_out)

    flops = 2 * N * OC2 * K * S
    bytes_accessed = 4 * (N * C * H * W + N * OC2 * S + OC2 * K + OC2)

    # TODO(synk): for large H (or large C), add a second "parallel" grid axis
    # that tiles H_out with a (kh - sh)-row input halo via manual
    # make_async_copy on a pl.ANY HBM ref, sizing the tile so the double-
    # buffered blocks stay under ~32 MiB scoped VMEM (v7x has 64 MiB physical).
    return pl.pallas_call(
        kernel,
        out_shape=jax.ShapeDtypeStruct((N, OC2, S), jnp.float32),
        grid_spec=pltpu.PrefetchScalarGridSpec(
            num_scalar_prefetch=0,
            grid=(N,),
            in_specs=[
                # Weight / bias: constant index_map -> resident across steps.
                pl.BlockSpec((OC2, K), lambda n: (0, 0)),
                pl.BlockSpec((OC2, 1), lambda n: (0, 0)),
                # One un-padded image per grid step (padding folded in-kernel).
                pl.BlockSpec((1, C, H, W), lambda n: (n, 0, 0, 0)),
            ],
            out_specs=pl.BlockSpec((1, OC2, S), lambda n: (n, 0, 0)),
            scratch_shapes=[pltpu.VMEM((K, S), jnp.float32)],
        ),
        compiler_params=pltpu.CompilerParams(
            dimension_semantics=("parallel",)),
        cost_estimate=pl.CostEstimate(
            flops=flops, transcendentals=0, bytes_accessed=bytes_accessed),
    )(w2d, b2d, x)


# ------------------------------ Module wrapper ----------------------------- #
class ComplexConv2dPallas:
    def __init__(self, in_channels, out_channels,
                 kernel_size=(5, 2), stride=(2, 1), padding=(2, 1),
                 key=jax.random.PRNGKey(0)):
        self.in_channels = in_channels
        self.out_channels = out_channels
        self.kernel_size = kernel_size
        self.stride = stride
        self.padding = padding

        kh, kw = kernel_size
        k_r, k_i = jax.random.split(key)
        # nn.init.normal_(std=0.05); biases initialised to 0 (but still applied
        # in the kernel, so loaded non-zero biases would not be dropped).
        self.w_real = 0.05 * jax.random.normal(
            k_r, (out_channels, in_channels, kh, kw), dtype=jnp.float32)
        self.w_imag = 0.05 * jax.random.normal(
            k_i, (out_channels, in_channels, kh, kw), dtype=jnp.float32)
        self.bias_real = jnp.zeros((out_channels,), dtype=jnp.float32)
        self.bias_imag = jnp.zeros((out_channels,), dtype=jnp.float32)

    def _combined_weight(self):
        # (2*Cout, 2*Cin, kh, kw)
        top = jnp.concatenate([self.w_real, -self.w_imag], axis=1)   # real out
        bot = jnp.concatenate([self.w_imag, self.w_real], axis=1)    # imag out
        return jnp.concatenate([top, bot], axis=0)

    def _combined_bias(self):
        # real out gets b_r - b_i ; imag out gets b_i + b_r
        return jnp.concatenate([self.bias_real - self.bias_imag,
                                self.bias_imag + self.bias_real], axis=0)

    def __call__(self, x):
        # x: (N, 2*Cin, H, W) -- NCHW like PyTorch.
        N, Cx, H, W = x.shape
        assert Cx == 2 * self.in_channels
        kh, kw = self.kernel_size
        sh, sw = self.stride
        ph, pw = self.padding
        assert sw == 1  # TODO(synk): width stride > 1 (module default is 1)
        C = Cx
        OC2 = 2 * self.out_channels

        H_out = (H + 2 * ph - kh) // sh + 1
        W_out = (W + pw - kw) // sw + 1
        assert H_out >= 1 and W_out >= 1

        # (OC2, C, kh, kw) -> (OC2, kh, kw, C) -> (OC2, K): the K axis is
        # tap-major, k = (dh*kw + dw)*C + c, matching the kernel's patch rows.
        w2d = jnp.transpose(self._combined_weight(), (0, 2, 3, 1)).reshape(OC2, -1)
        b2d = self._combined_bias().reshape(OC2, 1)

        out_flat = _pallas_complex_conv(
            x, w2d, b2d, C=C, OC2=OC2, kh=kh, kw=kw, sh=sh, sw=sw,
            ph=ph, pw=pw, H_out=H_out, W_out=W_out)
        # Free (row-major, metadata-only) reshape back to NCHW.
        return out_flat.reshape(N, OC2, H_out, W_out)


# -------------------------------- reference -------------------------------- #
def _reference(module, x):
    """Pure-JAX reference matching the PyTorch forward exactly."""
    ph, pw = module.padding
    x = jnp.pad(x, ((0, 0), (0, 0), (0, 0), (pw, 0)))
    real, imag = jnp.split(x, 2, axis=1)

    def conv(inp, w, b):
        y = lax.conv_general_dilated(
            inp, w, window_strides=module.stride,
            padding=((ph, ph), (0, 0)),
            dimension_numbers=("NCHW", "OIHW", "NCHW"))
        return y + b[None, :, None, None]

    rr = conv(real, module.w_real, module.bias_real)
    ii = conv(imag, module.w_imag, module.bias_imag)
    ri = conv(real, module.w_imag, module.bias_imag)
    ir = conv(imag, module.w_real, module.bias_real)
    return jnp.concatenate([rr - ii, ri + ir], axis=1)


if __name__ == "__main__":
    key = jax.random.PRNGKey(0)
    k_x, k_m = jax.random.split(key)

    in_channels, out_channels = 2, 4
    N, H, W = 2, 16, 16
    x = jax.random.normal(k_x, (N, 2 * in_channels, H, W), dtype=jnp.float32)

    module = ComplexConv2dPallas(in_channels, out_channels, key=k_m)

    out = jax.block_until_ready(module(x))
    ref = jax.block_until_ready(_reference(module, x))

    assert out.shape == ref.shape, (out.shape, ref.shape)
    max_err = float(jnp.max(jnp.abs(out - ref)))
    assert max_err < 2e-3, max_err

    print("KERNEL_OK")
</pallas_src>

<mosaic_0001>
module attributes {stable_mosaic.version = 11 : i64} {
  func.func @_complex_conv_kernel(%arg0: i32, %arg1: memref<8x40xf32, #tpu.memory_space<vmem>>, %arg2: memref<8x1xf32, #tpu.memory_space<vmem>>, %arg3: memref<1x4x16x16xf32, #tpu.memory_space<vmem>>, %arg4: memref<1x8x128xf32, #tpu.memory_space<vmem>>, %arg5: memref<40x128xf32, #tpu.memory_space<vmem>>) attributes {dimension_semantics = [#tpu.dimension_semantics<parallel>], iteration_bounds = array<i64: 2>, scalar_prefetch = 0 : i64, scratch_operands = 1 : i64, tpu.core_type = #tpu.core_type<tc>, window_params = [{pipeline_mode = #tpu.pipeline_mode<synchronous>, transform_indices = @transform_0, window_bounds = array<i64: 8, 40>}, {pipeline_mode = #tpu.pipeline_mode<synchronous>, transform_indices = @transform_1, window_bounds = array<i64: 8, 1>}, {transform_indices = @transform_2, window_bounds = array<i64: 1, 4, 16, 16>}, {transform_indices = @transform_3, window_bounds = array<i64: 1, 8, 128>}]} {
    %cst = arith.constant 0.000000e+00 : f32
    %0 = vector.broadcast %cst : f32 to vector<40x128xf32>
    %c0 = arith.constant 0 : index
    %c0_0 = arith.constant 0 : index
    %1 = vector.load %arg5[%c0, %c0_0] : memref<40x128xf32, #tpu.memory_space<vmem>>, vector<40x128xf32>
    tpu.vector_store %arg5[%c0, %c0_0], %0 {strides = array<i32>} : memref<40x128xf32, #tpu.memory_space<vmem>>, vector<40x128xf32>,
    %c0_1 = arith.constant 0 : index
    %c0_2 = arith.constant 0 : index
    %c0_3 = arith.constant 0 : index
    %c0_4 = arith.constant 0 : index
    %2 = vector.load %arg3[%c0_1, %c0_2, %c0_3, %c0_4] : memref<1x4x16x16xf32, #tpu.memory_space<vmem>>, vector<1x4x1x15xf32>
    %3 = vector.shape_cast %2 : vector<1x4x1x15xf32> to vector<4x15xf32>
    %c0_5 = arith.constant 0 : index
    %c17 = arith.constant 17 : index
    %4 = vector.load %arg5[%c0_5, %c17] : memref<40x128xf32, #tpu.memory_space<vmem>>, vector<4x15xf32>
    tpu.vector_store %arg5[%c0_5, %c17], %3 {strides = array<i32>} : memref<40x128xf32, #tpu.memory_space<vmem>>, vector<4x15xf32>,
    %c0_6 = arith.constant 0 : index
    %c0_7 = arith.constant 0 : index
    %c2 = arith.constant 2 : index
    %c0_8 = arith.constant 0 : index
    %5 = vector.load %arg3[%c0_6, %c0_7, %c2, %c0_8] : memref<1x4x16x16xf32, #tpu.memory_space<vmem>>, vector<1x4x1x15xf32>
    %6 = vector.shape_cast %5 : vector<1x4x1x15xf32> to vector<4x15xf32>
    %c0_9 = arith.constant 0 : index
    %c33 = arith.constant 33 : index
    %7 = vector.load %arg5[%c0_9, %c33] : memref<40x128xf32, #tpu.memory_space<vmem>>, vector<4x15xf32>
    tpu.vector_store %arg5[%c0_9, %c33], %6 {strides = array<i32>} : memref<40x128xf32, #tpu.memory_space<vmem>>, vector<4x15xf32>,
    %c0_10 = arith.constant 0 : index
    %c0_11 = arith.constant 0 : index
    %c4 = arith.constant 4 : index
    %c0_12 = arith.constant 0 : index
    %8 = vector.load %arg3[%c0_10, %c0_11, %c4, %c0_12] : memref<1x4x16x16xf32, #tpu.memory_space<vmem>>, vector<1x4x1x15xf32>
    %9 = vector.shape_cast %8 : vector<1x4x1x15xf32> to vector<4x15xf32>
    %c0_13 = arith.constant 0 : index
    %c49 = arith.constant 49 : index
    %10 = vector.load %arg5[%c0_13, %c49] : memref<40x128xf32, #tpu.memory_space<vmem>>, vector<4x15xf32>
    tpu.vector_store %arg5[%c0_13, %c49], %9 {strides = array<i32>} : memref<40x128xf32, #tpu.memory_space<vmem>>, vector<4x15xf32>,
    %c0_14 = arith.constant 0 : index
    %c0_15 = arith.constant 0 : index
    %c6 = arith.constant 6 : index
    %c0_16 = arith.constant 0 : index
    %11 = vector.load %arg3[%c0_14, %c0_15, %c6, %c0_16] : memref<1x4x16x16xf32, #tpu.memory_space<vmem>>, vector<1x4x1x15xf32>
    %12 = vector.shape_cast %11 : vector<1x4x1x15xf32> to vector<4x15xf32>
    %c0_17 = arith.constant 0 : index
    %c65 = arith.constant 65 : index
    %13 = vector.load %arg5[%c0_17, %c65] : memref<40x128xf32, #tpu.memory_space<vmem>>, vector<4x15xf32>
    tpu.vector_store %arg5[%c0_17, %c65], %12 {strides = array<i32>} : memref<40x128xf32, #tpu.memory_space<vmem>>, vector<4x15xf32>,
    %c0_18 = arith.constant 0 : index
    %c0_19 = arith.constant 0 : index
    %c8 = arith.constant 8 : index
    %c0_20 = arith.constant 0 : index
    %14 = vector.load %arg3[%c0_18, %c0_19, %c8, %c0_20] : memref<1x4x16x16xf32, #tpu.memory_space<vmem>>, vector<1x4x1x15xf32>
    %15 = vector.shape_cast %14 : vector<1x4x1x15xf32> to vector<4x15xf32>
    %c0_21 = arith.constant 0 : index
    %c81 = arith.constant 81 : index
    %16 = vector.load %arg5[%c0_21, %c81] : memref<40x128xf32, #tpu.memory_space<vmem>>, vector<4x15xf32>
    tpu.vector_store %arg5[%c0_21, %c81], %15 {strides = array<i32>} : memref<40x128xf32, #tpu.memory_space<vmem>>, vector<4x15xf32>,
    %c0_22 = arith.constant 0 : index
    %c0_23 = arith.constant 0 : index
    %c10 = arith.constant 10 : index
    %c0_24 = arith.constant 0 : index
    %17 = vector.load %arg3[%c0_22, %c0_23, %c10, %c0_24] : memref<1x4x16x16xf32, #tpu.memory_space<vmem>>, vector<1x4x1x15xf32>
    %18 = vector.shape_cast %17 : vector<1x4x1x15xf32> to vector<4x15xf32>
    %c0_25 = arith.constant 0 : index
    %c97 = arith.constant 97 : index
    %19 = vector.load %arg5[%c0_25, %c97] : memref<40x128xf32, #tpu.memory_space<vmem>>, vector<4x15xf32>
    tpu.vector_store %arg5[%c0_25, %c97], %18 {strides = array<i32>} : memref<40x128xf32, #tpu.memory_space<vmem>>, vector<4x15xf32>,
    %c0_26 = arith.constant 0 : index
    %c0_27 = arith.constant 0 : index
    %c12 = arith.constant 12 : index
    %c0_28 = arith.constant 0 : index
    %20 = vector.load %arg3[%c0_26, %c0_27, %c12, %c0_28] : memref<1x4x16x16xf32, #tpu.memory_space<vmem>>, vector<1x4x1x15xf32>
    %21 = vector.shape_cast %20 : vector<1x4x1x15xf32> to vector<4x15xf32>
    %c0_29 = arith.constant 0 : index
    %c113 = arith.constant 113 : index
    %22 = vector.load %arg5[%c0_29, %c113] : memref<40x128xf32, #tpu.memory_space<vmem>>, vector<4x15xf32>
    tpu.vector_store %arg5[%c0_29, %c113], %21 {strides = array<i32>} : memref<40x128xf32, #tpu.memory_space<vmem>>, vector<4x15xf32>,
    %c0_30 = arith.constant 0 : index
    %c0_31 = arith.constant 0 : index
    %c0_32 = arith.constant 0 : index
    %c0_33 = arith.constant 0 : index
    %23 = vector.load %arg3[%c0_30, %c0_31, %c0_32, %c0_33] : memref<1x4x16x16xf32, #tpu.memory_space<vmem>>, vector<1x4x1x16xf32>
    %24 = vector.shape_cast %23 : vector<1x4x1x16xf32> to vector<4x16xf32>
    %c4_34 = arith.constant 4 : index
    %c16 = arith.constant 16 : index
    %25 = vector.load %arg5[%c4_34, %c16] : memref<40x128xf32, #tpu.memory_space<vmem>>, vector<4x16xf32>
    tpu.vector_store %arg5[%c4_34, %c16], %24 {strides = array<i32>} : memref<40x128xf32, #tpu.memory_space<vmem>>, vector<4x16xf32>,
    %c0_35 = arith.constant 0 : index
    %c0_36 = arith.constant 0 : index
    %c2_37 = arith.constant 2 : index
    %c0_38 = arith.constant 0 : index
    %26 = vector.load %arg3[%c0_35, %c0_36, %c2_37, %c0_38] : memref<1x4x16x16xf32, #tpu.memory_space<vmem>>, vector<1x4x1x16xf32>
    %27 = vector.shape_cast %26 : vector<1x4x1x16xf32> to vector<4x16xf32>
    %c4_39 = arith.constant 4 : index
    %c32 = arith.constant 32 : index
    %28 = vector.load %arg5[%c4_39, %c32] : memref<40x128xf32, #tpu.memory_space<vmem>>, vector<4x16xf32>
    tpu.vector_store %arg5[%c4_39, %c32], %27 {strides = array<i32>} : memref<40x128xf32, #tpu.memory_space<vmem>>, vector<4x16xf32>,
    %c0_40 = arith.constant 0 : index
    %c0_41 = arith.constant 0 : index
    %c4_42 = arith.constant 4 : index
    %c0_43 = arith.constant 0 : index
    %29 = vector.load %arg3[%c0_40, %c0_41, %c4_42, %c0_43] : memref<1x4x16x16xf32, #tpu.memory_space<vmem>>, vector<1x4x1x16xf32>
    %30 = vector.shape_cast %29 : vector<1x4x1x16xf32> to vector<4x16xf32>
    %c4_44 = arith.constant 4 : index
    %c48 = arith.constant 48 : index
    %31 = vector.load %arg5[%c4_44, %c48] : memref<40x128xf32, #tpu.memory_space<vmem>>, vector<4x16xf32>
    tpu.vector_store %arg5[%c4_44, %c48], %30 {strides = array<i32>} : memref<40x128xf32, #tpu.memory_space<vmem>>, vector<4x16xf32>,
    %c0_45 = arith.constant 0 : index
    %c0_46 = arith.constant 0 : index
    %c6_47 = arith.constant 6 : index
    %c0_48 = arith.constant 0 : index
    %32 = vector.load %arg3[%c0_45, %c0_46, %c6_47, %c0_48] : memref<1x4x16x16xf32, #tpu.memory_space<vmem>>, vector<1x4x1x16xf32>
    %33 = vector.shape_cast %32 : vector<1x4x1x16xf32> to vector<4x16xf32>
    %c4_49 = arith.constant 4 : index
    %c64 = arith.constant 64 : index
    %34 = vector.load %arg5[%c4_49, %c64] : memref<40x128xf32, #tpu.memory_space<vmem>>, vector<4x16xf32>
    tpu.vector_store %arg5[%c4_49, %c64], %33 {strides = array<i32>} : memref<40x128xf32, #tpu.memory_space<vmem>>, vector<4x16xf32>,
    %c0_50 = arith.constant 0 : index
    %c0_51 = arith.constant 0 : index
    %c8_52 = arith.constant 8 : index
    %c0_53 = arith.constant 0 : index
    %35 = vector.load %arg3[%c0_50, %c0_51, %c8_52, %c0_53] : memref<1x4x16x16xf32, #tpu.memory_space<vmem>>, vector<1x4x1x16xf32>
    %36 = vector.shape_cast %35 : vector<1x4x1x16xf32> to vector<4x16xf32>
    %c4_54 = arith.constant 4 : index
    %c80 = arith.constant 80 : index
    %37 = vector.load %arg5[%c4_54, %c80] : memref<40x128xf32, #tpu.memory_space<vmem>>, vector<4x16xf32>
    tpu.vector_store %arg5[%c4_54, %c80], %36 {strides = array<i32>} : memref<40x128xf32, #tpu.memory_space<vmem>>, vector<4x16xf32>,
    %c0_55 = arith.constant 0 : index
    %c0_56 = arith.constant 0 : index
    %c10_57 = arith.constant 10 : index
    %c0_58 = arith.constant 0 : index
    %38 = vector.load %arg3[%c0_55, %c0_56, %c10_57, %c0_58] : memref<1x4x16x16xf32, #tpu.memory_space<vmem>>, vector<1x4x1x16xf32>
    %39 = vector.shape_cast %38 : vector<1x4x1x16xf32> to vector<4x16xf32>
    %c4_59 = arith.constant 4 : index
    %c96 = arith.constant 96 : index
    %40 = vector.load %arg5[%c4_59, %c96] : memref<40x128xf32, #tpu.memory_space<vmem>>, vector<4x16xf32>
    tpu.vector_store %arg5[%c4_59, %c96], %39 {strides = array<i32>} : memref<40x128xf32, #tpu.memory_space<vmem>>, vector<4x16xf32>,
    %c0_60 = arith.constant 0 : index
    %c0_61 = arith.constant 0 : index
    %c12_62 = arith.constant 12 : index
    %c0_63 = arith.constant 0 : index
    %41 = vector.load %arg3[%c0_60, %c0_61, %c12_62, %c0_63] : memref<1x4x16x16xf32, #tpu.memory_space<vmem>>, vector<1x4x1x16xf32>
    %42 = vector.shape_cast %41 : vector<1x4x1x16xf32> to vector<4x16xf32>
    %c4_64 = arith.constant 4 : index
    %c112 = arith.constant 112 : index
    %43 = vector.load %arg5[%c4_64, %c112] : memref<40x128xf32, #tpu.memory_space<vmem>>, vector<4x16xf32>
    tpu.vector_store %arg5[%c4_64, %c112], %42 {strides = array<i32>} : memref<40x128xf32, #tpu.memory_space<vmem>>, vector<4x16xf32>,
    %c0_65 = arith.constant 0 : index
    %c0_66 = arith.constant 0 : index
    %c1 = arith.constant 1 : index
    %c0_67 = arith.constant 0 : index
    %44 = vector.load %arg3[%c0_65, %c0_66, %c1, %c0_67] : memref<1x4x16x16xf32, #tpu.memory_space<vmem>>, vector<1x4x1x15xf32>
    %45 = vector.shape_cast %44 : vector<1x4x1x15xf32> to vector<4x15xf32>
    %c8_68 = arith.constant 8 : index
    %c17_69 = arith.constant 17 : index
    %46 = vector.load %arg5[%c8_68, %c17_69] : memref<40x128xf32, #tpu.memory_space<vmem>>, vector<4x15xf32>
    tpu.vector_store %arg5[%c8_68, %c17_69], %45 {strides = array<i32>} : memref<40x128xf32, #tpu.memory_space<vmem>>, vector<4x15xf32>,
    %c0_70 = arith.constant 0 : index
    %c0_71 = arith.constant 0 : index
    %c3 = arith.constant 3 : index
    %c0_72 = arith.constant 0 : index
    %47 = vector.load %arg3[%c0_70, %c0_71, %c3, %c0_72] : memref<1x4x16x16xf32, #tpu.memory_space<vmem>>, vector<1x4x1x15xf32>
    %48 = vector.shape_cast %47 : vector<1x4x1x15xf32> to vector<4x15xf32>
    %c8_73 = arith.constant 8 : index
    %c33_74 = arith.constant 33 : index
    %49 = vector.load %arg5[%c8_73, %c33_74] : memref<40x128xf32, #tpu.memory_space<vmem>>, vector<4x15xf32>
    tpu.vector_store %arg5[%c8_73, %c33_74], %48 {strides = array<i32>} : memref<40x128xf32, #tpu.memory_space<vmem>>, vector<4x15xf32>,
    %c0_75 = arith.constant 0 : index
    %c0_76 = arith.constant 0 : index
    %c5 = arith.constant 5 : index
    %c0_77 = arith.constant 0 : index
    %50 = vector.load %arg3[%c0_75, %c0_76, %c5, %c0_77] : memref<1x4x16x16xf32, #tpu.memory_space<vmem>>, vector<1x4x1x15xf32>
    %51 = vector.shape_cast %50 : vector<1x4x1x15xf32> to vector<4x15xf32>
    %c8_78 = arith.constant 8 : index
    %c49_79 = arith.constant 49 : index
    %52 = vector.load %arg5[%c8_78, %c49_79] : memref<40x128xf32, #tpu.memory_space<vmem>>, vector<4x15xf32>
    tpu.vector_store %arg5[%c8_78, %c49_79], %51 {strides = array<i32>} : memref<40x128xf32, #tpu.memory_space<vmem>>, vector<4x15xf32>,
    %c0_80 = arith.constant 0 : index
    %c0_81 = arith.constant 0 : index
    %c7 = arith.constant 7 : index
    %c0_82 = arith.constant 0 : index
    %53 = vector.load %arg3[%c0_80, %c0_81, %c7, %c0_82] : memref<1x4x16x16xf32, #tpu.memory_space<vmem>>, vector<1x4x1x15xf32>
    %54 = vector.shape_cast %53 : vector<1x4x1x15xf32> to vector<4x15xf32>
    %c8_83 = arith.constant 8 : index
    %c65_84 = arith.constant 65 : index
    %55 = vector.load %arg5[%c8_83, %c65_84] : memref<40x128xf32, #tpu.memory_space<vmem>>, vector<4x15xf32>
    tpu.vector_store %arg5[%c8_83, %c65_84], %54 {strides = array<i32>} : memref<40x128xf32, #tpu.memory_space<vmem>>, vector<4x15xf32>,
    %c0_85 = arith.constant 0 : index
    %c0_86 = arith.constant 0 : index
    %c9 = arith.constant 9 : index
    %c0_87 = arith.constant 0 : index
    %56 = vector.load %arg3[%c0_85, %c0_86, %c9, %c0_87] : memref<1x4x16x16xf32, #tpu.memory_space<vmem>>, vector<1x4x1x15xf32>
    %57 = vector.shape_cast %56 : vector<1x4x1x15xf32> to vector<4x15xf32>
    %c8_88 = arith.constant 8 : index
    %c81_89 = arith.constant 81 : index
    %58 = vector.load %arg5[%c8_88, %c81_89] : memref<40x128xf32, #tpu.memory_space<vmem>>, vector<4x15xf32>
    tpu.vector_store %arg5[%c8_88, %c81_89], %57 {strides = array<i32>} : memref<40x128xf32, #tpu.memory_space<vmem>>, vector<4x15xf32>,
    %c0_90 = arith.constant 0 : index
    %c0_91 = arith.constant 0 : index
    %c11 = arith.constant 11 : index
    %c0_92 = arith.constant 0 : index
    %59 = vector.load %arg3[%c0_90, %c0_91, %c11, %c0_92] : memref<1x4x16x16xf32, #tpu.memory_space<vmem>>, vector<1x4x1x15xf32>
    %60 = vector.shape_cast %59 : vector<1x4x1x15xf32> to vector<4x15xf32>
    %c8_93 = arith.constant 8 : index
    %c97_94 = arith.constant 97 : index
    %61 = vector.load %arg5[%c8_93, %c97_94] : memref<40x128xf32, #tpu.memory_space<vmem>>, vector<4x15xf32>
    tpu.vector_store %arg5[%c8_93, %c97_94], %60 {strides = array<i32>} : memref<40x128xf32, #tpu.memory_space<vmem>>, vector<4x15xf32>,
    %c0_95 = arith.constant 0 : index
    %c0_96 = arith.constant 0 : index
    %c13 = arith.constant 13 : index
    %c0_97 = arith.constant 0 : index
    %62 = vector.load %arg3[%c0_95, %c0_96, %c13, %c0_97] : memref<1x4x16x16xf32, #tpu.memory_space<vmem>>, vector<1x4x1x15xf32>
    %63 = vector.shape_cast %62 : vector<1x4x1x15xf32> to vector<4x15xf32>
    %c8_98 = arith.constant 8 : index
    %c113_99 = arith.constant 113 : index
    %64 = vector.load %arg5[%c8_98, %c113_99] : memref<40x128xf32, #tpu.memory_space<vmem>>, vector<4x15xf32>
    tpu.vector_store %arg5[%c8_98, %c113_99], %63 {strides = array<i32>} : memref<40x128xf32, #tpu.memory_space<vmem>>, vector<4x15xf32>,
    %c0_100 = arith.constant 0 : index
    %c0_101 = arith.constant 0 : index
    %c1_102 = arith.constant 1 : index
    %c0_103 = arith.constant 0 : index
    %65 = vector.load %arg3[%c0_100, %c0_101, %c1_102, %c0_103] : memref<1x4x16x16xf32, #tpu.memory_space<vmem>>, vector<1x4x1x16xf32>
    %66 = vector.shape_cast %65 : vector<1x4x1x16xf32> to vector<4x16xf32>
    %c12_104 = arith.constant 12 : index
    %c16_105 = arith.constant 16 : index
    %67 = vector.load %arg5[%c12_104, %c16_105] : memref<40x128xf32, #tpu.memory_space<vmem>>, vector<4x16xf32>
    tpu.vector_store %arg5[%c12_104, %c16_105], %66 {strides = array<i32>} : memref<40x128xf32, #tpu.memory_space<vmem>>, vector<4x16xf32>,
    %c0_106 = arith.constant 0 : index
    %c0_107 = arith.constant 0 : index
    %c3_108 = arith.constant 3 : index
    %c0_109 = arith.constant 0 : index
    %68 = vector.load %arg3[%c0_106, %c0_107, %c3_108, %c0_109] : memref<1x4x16x16xf32, #tpu.memory_space<vmem>>, vector<1x4x1x16xf32>
    %69 = vector.shape_cast %68 : vector<1x4x1x16xf32> to vector<4x16xf32>
    %c12_110 = arith.constant 12 : index
    %c32_111 = arith.constant 32 : index
    %70 = vector.load %arg5[%c12_110, %c32_111] : memref<40x128xf32, #tpu.memory_space<vmem>>, vector<4x16xf32>
    tpu.vector_store %arg5[%c12_110, %c32_111], %69 {strides = array<i32>} : memref<40x128xf32, #tpu.memory_space<vmem>>, vector<4x16xf32>,
    %c0_112 = arith.constant 0 : index
    %c0_113 = arith.constant 0 : index
    %c5_114 = arith.constant 5 : index
    %c0_115 = arith.constant 0 : index
    %71 = vector.load %arg3[%c0_112, %c0_113, %c5_114, %c0_115] : memref<1x4x16x16xf32, #tpu.memory_space<vmem>>, vector<1x4x1x16xf32>
    %72 = vector.shape_cast %71 : vector<1x4x1x16xf32> to vector<4x16xf32>
    %c12_116 = arith.constant 12 : index
    %c48_117 = arith.constant 48 : index
    %73 = vector.load %arg5[%c12_116, %c48_117] : memref<40x128xf32, #tpu.memory_space<vmem>>, vector<4x16xf32>
    tpu.vector_store %arg5[%c12_116, %c48_117], %72 {strides = array<i32>} : memref<40x128xf32, #tpu.memory_space<vmem>>, vector<4x16xf32>,
    %c0_118 = arith.constant 0 : index
    %c0_119 = arith.constant 0 : index
    %c7_120 = arith.constant 7 : index
    %c0_121 = arith.constant 0 : index
    %74 = vector.load %arg3[%c0_118, %c0_119, %c7_120, %c0_121] : memref<1x4x16x16xf32, #tpu.memory_space<vmem>>, vector<1x4x1x16xf32>
    %75 = vector.shape_cast %74 : vector<1x4x1x16xf32> to vector<4x16xf32>
    %c12_122 = arith.constant 12 : index
    %c64_123 = arith.constant 64 : index
    %76 = vector.load %arg5[%c12_122, %c64_123] : memref<40x128xf32, #tpu.memory_space<vmem>>, vector<4x16xf32>
    tpu.vector_store %arg5[%c12_122, %c64_123], %75 {strides = array<i32>} : memref<40x128xf32, #tpu.memory_space<vmem>>, vector<4x16xf32>,
    %c0_124 = arith.constant 0 : index
    %c0_125 = arith.constant 0 : index
    %c9_126 = arith.constant 9 : index
    %c0_127 = arith.constant 0 : index
    %77 = vector.load %arg3[%c0_124, %c0_125, %c9_126, %c0_127] : memref<1x4x16x16xf32, #tpu.memory_space<vmem>>, vector<1x4x1x16xf32>
    %78 = vector.shape_cast %77 : vector<1x4x1x16xf32> to vector<4x16xf32>
    %c12_128 = arith.constant 12 : index
    %c80_129 = arith.constant 80 : index
    %79 = vector.load %arg5[%c12_128, %c80_129] : memref<40x128xf32, #tpu.memory_space<vmem>>, vector<4x16xf32>
    tpu.vector_store %arg5[%c12_128, %c80_129], %78 {strides = array<i32>} : memref<40x128xf32, #tpu.memory_space<vmem>>, vector<4x16xf32>,
    %c0_130 = arith.constant 0 : index
    %c0_131 = arith.constant 0 : index
    %c11_132 = arith.constant 11 : index
    %c0_133 = arith.constant 0 : index
    %80 = vector.load %arg3[%c0_130, %c0_131, %c11_132, %c0_133] : memref<1x4x16x16xf32, #tpu.memory_space<vmem>>, vector<1x4x1x16xf32>
    %81 = vector.shape_cast %80 : vector<1x4x1x16xf32> to vector<4x16xf32>
    %c12_134 = arith.constant 12 : index
    %c96_135 = arith.constant 96 : index
    %82 = vector.load %arg5[%c12_134, %c96_135] : memref<40x128xf32, #tpu.memory_space<vmem>>, vector<4x16xf32>
    tpu.vector_store %arg5[%c12_134, %c96_135], %81 {strides = array<i32>} : memref<40x128xf32, #tpu.memory_space<vmem>>, vector<4x16xf32>,
    %c0_136 = arith.constant 0 : index
    %c0_137 = arith.constant 0 : index
    %c13_138 = arith.constant 13 : index
    %c0_139 = arith.constant 0 : index
    %83 = vector.load %arg3[%c0_136, %c0_137, %c13_138, %c0_139] : memref<1x4x16x16xf32, #tpu.memory_space<vmem>>, vector<1x4x1x16xf32>
    %84 = vector.shape_cast %83 : vector<1x4x1x16xf32> to vector<4x16xf32>
    %c12_140 = arith.constant 12 : index
    %c112_141 = arith.constant 112 : index
    %85 = vector.load %arg5[%c12_140, %c112_141] : memref<40x128xf32, #tpu.memory_space<vmem>>, vector<4x16xf32>
    tpu.vector_store %arg5[%c12_140, %c112_141], %84 {strides = array<i32>} : memref<40x128xf32, #tpu.memory_space<vmem>>, vector<4x16xf32>,
    %c0_142 = arith.constant 0 : index
    %c0_143 = arith.constant 0 : index
    %c0_144 = arith.constant 0 : index
    %c0_145 = arith.constant 0 : index
    %86 = vector.load %arg3[%c0_142, %c0_143, %c0_144, %c0_145] : memref<1x4x16x16xf32, #tpu.memory_space<vmem>>, vector<1x4x1x15xf32>
    %87 = vector.shape_cast %86 : vector<1x4x1x15xf32> to vector<4x15xf32>
    %c16_146 = arith.constant 16 : index
    %c1_147 = arith.constant 1 : index
    %88 = vector.load %arg5[%c16_146, %c1_147] : memref<40x128xf32, #tpu.memory_space<vmem>>, vector<4x15xf32>
    tpu.vector_store %arg5[%c16_146, %c1_147], %87 {strides = array<i32>} : memref<40x128xf32, #tpu.memory_space<vmem>>, vector<4x15xf32>,
    %c0_148 = arith.constant 0 : index
    %c0_149 = arith.constant 0 : index
    %c2_150 = arith.constant 2 : index
    %c0_151 = arith.constant 0 : index
    %89 = vector.load %arg3[%c0_148, %c0_149, %c2_150, %c0_151] : memref<1x4x16x16xf32, #tpu.memory_space<vmem>>, vector<1x4x1x15xf32>
    %90 = vector.shape_cast %89 : vector<1x4x1x15xf32> to vector<4x15xf32>
    %c16_152 = arith.constant 16 : index
    %c17_153 = arith.constant 17 : index
    %91 = vector.load %arg5[%c16_152, %c17_153] : memref<40x128xf32, #tpu.memory_space<vmem>>, vector<4x15xf32>
    tpu.vector_store %arg5[%c16_152, %c17_153], %90 {strides = array<i32>} : memref<40x128xf32, #tpu.memory_space<vmem>>, vector<4x15xf32>,
    %c0_154 = arith.constant 0 : index
    %c0_155 = arith.constant 0 : index
    %c4_156 = arith.constant 4 : index
    %c0_157 = arith.constant 0 : index
    %92 = vector.load %arg3[%c0_154, %c0_155, %c4_156, %c0_157] : memref<1x4x16x16xf32, #tpu.memory_space<vmem>>, vector<1x4x1x15xf32>
    %93 = vector.shape_cast %92 : vector<1x4x1x15xf32> to vector<4x15xf32>
    %c16_158 = arith.constant 16 : index
    %c33_159 = arith.constant 33 : index
    %94 = vector.load %arg5[%c16_158, %c33_159] : memref<40x128xf32, #tpu.memory_space<vmem>>, vector<4x15xf32>
    tpu.vector_store %arg5[%c16_158, %c33_159], %93 {strides = array<i32>} : memref<40x128xf32, #tpu.memory_space<vmem>>, vector<4x15xf32>,
    %c0_160 = arith.constant 0 : index
    %c0_161 = arith.constant 0 : index
    %c6_162 = arith.constant 6 : index
    %c0_163 = arith.constant 0 : index
    %95 = vector.load %arg3[%c0_160, %c0_161, %c6_162, %c0_163] : memref<1x4x16x16xf32, #tpu.memory_space<vmem>>, vector<1x4x1x15xf32>
    %96 = vector.shape_cast %95 : vector<1x4x1x15xf32> to vector<4x15xf32>
    %c16_164 = arith.constant 16 : index
    %c49_165 = arith.constant 49 : index
    %97 = vector.load %arg5[%c16_164, %c49_165] : memref<40x128xf32, #tpu.memory_space<vmem>>, vector<4x15xf32>
    tpu.vector_store %arg5[%c16_164, %c49_165], %96 {strides = array<i32>} : memref<40x128xf32, #tpu.memory_space<vmem>>, vector<4x15xf32>,
    %c0_166 = arith.constant 0 : index
    %c0_167 = arith.constant 0 : index
    %c8_168 = arith.constant 8 : index
    %c0_169 = arith.constant 0 : index
    %98 = vector.load %arg3[%c0_166, %c0_167, %c8_168, %c0_169] : memref<1x4x16x16xf32, #tpu.memory_space<vmem>>, vector<1x4x1x15xf32>
    %99 = vector.shape_cast %98 : vector<1x4x1x15xf32> to vector<4x15xf32>
    %c16_170 = arith.constant 16 : index
    %c65_171 = arith.constant 65 : index
    %100 = vector.load %arg5[%c16_170, %c65_171] : memref<40x128xf32, #tpu.memory_space<vmem>>, vector<4x15xf32>
    tpu.vector_store %arg5[%c16_170, %c65_171], %99 {strides = array<i32>} : memref<40x128xf32, #tpu.memory_space<vmem>>, vector<4x15xf32>,
    %c0_172 = arith.constant 0 : index
    %c0_173 = arith.constant 0 : index
    %c10_174 = arith.constant 10 : index
    %c0_175 = arith.constant 0 : index
    %101 = vector.load %arg3[%c0_172, %c0_173, %c10_174, %c0_175] : memref<1x4x16x16xf32, #tpu.memory_space<vmem>>, vector<1x4x1x15xf32>
    %102 = vector.shape_cast %101 : vector<1x4x1x15xf32> to vector<4x15xf32>
    %c16_176 = arith.constant 16 : index
    %c81_177 = arith.constant 81 : index
    %103 = vector.load %arg5[%c16_176, %c81_177] : memref<40x128xf32, #tpu.memory_space<vmem>>, vector<4x15xf32>
    tpu.vector_store %arg5[%c16_176, %c81_177], %102 {strides = array<i32>} : memref<40x128xf32, #tpu.memory_space<vmem>>, vector<4x15xf32>,
    %c0_178 = arith.constant 0 : index
    %c0_179 = arith.constant 0 : index
    %c12_180 = arith.constant 12 : index
    %c0_181 = arith.constant 0 : index
    %104 = vector.load %arg3[%c0_178, %c0_179, %c12_180, %c0_181] : memref<1x4x16x16xf32, #tpu.memory_space<vmem>>, vector<1x4x1x15xf32>
    %105 = vector.shape_cast %104 : vector<1x4x1x15xf32> to vector<4x15xf32>
    %c16_182 = arith.constant 16 : index
    %c97_183 = arith.constant 97 : index
    %106 = vector.load %arg5[%c16_182, %c97_183] : memref<40x128xf32, #tpu.memory_space<vmem>>, vector<4x15xf32>
    tpu.vector_store %arg5[%c16_182, %c97_183], %105 {strides = array<i32>} : memref<40x128xf32, #tpu.memory_space<vmem>>, vector<4x15xf32>,
    %c0_184 = arith.constant 0 : index
    %c0_185 = arith.constant 0 : index
    %c14 = arith.constant 14 : index
    %c0_186 = arith.constant 0 : index
    %107 = vector.load %arg3[%c0_184, %c0_185, %c14, %c0_186] : memref<1x4x16x16xf32, #tpu.memory_space<vmem>>, vector<1x4x1x15xf32>
    %108 = vector.shape_cast %107 : vector<1x4x1x15xf32> to vector<4x15xf32>
    %c16_187 = arith.constant 16 : index
    %c113_188 = arith.constant 113 : index
    %109 = vector.load %arg5[%c16_187, %c113_188] : memref<40x128xf32, #tpu.memory_space<vmem>>, vector<4x15xf32>
    tpu.vector_store %arg5[%c16_187, %c113_188], %108 {strides = array<i32>} : memref<40x128xf32, #tpu.memory_space<vmem>>, vector<4x15xf32>,
    %c0_189 = arith.constant 0 : index
    %c0_190 = arith.constant 0 : index
    %c0_191 = arith.constant 0 : index
    %c0_192 = arith.constant 0 : index
    %110 = vector.load %arg3[%c0_189, %c0_190, %c0_191, %c0_192] : memref<1x4x16x16xf32, #tpu.memory_space<vmem>>, vector<1x4x1x16xf32>
    %111 = vector.shape_cast %110 : vector<1x4x1x16xf32> to vector<4x16xf32>
    %c20 = arith.constant 20 : index
    %c0_193 = arith.constant 0 : index
    %112 = vector.load %arg5[%c20, %c0_193] : memref<40x128xf32, #tpu.memory_space<vmem>>, vector<4x16xf32>
    tpu.vector_store %arg5[%c20, %c0_193], %111 {strides = array<i32>} : memref<40x128xf32, #tpu.memory_space<vmem>>, vector<4x16xf32>,
    %c0_194 = arith.constant 0 : index
    %c0_195 = arith.constant 0 : index
    %c2_196 = arith.constant 2 : index
    %c0_197 = arith.constant 0 : index
    %113 = vector.load %arg3[%c0_194, %c0_195, %c2_196, %c0_197] : memref<1x4x16x16xf32, #tpu.memory_space<vmem>>, vector<1x4x1x16xf32>
    %114 = vector.shape_cast %113 : vector<1x4x1x16xf32> to vector<4x16xf32>
    %c20_198 = arith.constant 20 : index
    %c16_199 = arith.constant 16 : index
    %115 = vector.load %arg5[%c20_198, %c16_199] : memref<40x128xf32, #tpu.memory_space<vmem>>, vector<4x16xf32>
    tpu.vector_store %arg5[%c20_198, %c16_199], %114 {strides = array<i32>} : memref<40x128xf32, #tpu.memory_space<vmem>>, vector<4x16xf32>,
    %c0_200 = arith.constant 0 : index
    %c0_201 = arith.constant 0 : index
    %c4_202 = arith.constant 4 : index
    %c0_203 = arith.constant 0 : index
    %116 = vector.load %arg3[%c0_200, %c0_201, %c4_202, %c0_203] : memref<1x4x16x16xf32, #tpu.memory_space<vmem>>, vector<1x4x1x16xf32>
    %117 = vector.shape_cast %116 : vector<1x4x1x16xf32> to vector<4x16xf32>
    %c20_204 = arith.constant 20 : index
    %c32_205 = arith.constant 32 : index
    %118 = vector.load %arg5[%c20_204, %c32_205] : memref<40x128xf32, #tpu.memory_space<vmem>>, vector<4x16xf32>
    tpu.vector_store %arg5[%c20_204, %c32_205], %117 {strides = array<i32>} : memref<40x128xf32, #tpu.memory_space<vmem>>, vector<4x16xf32>,
    %c0_206 = arith.constant 0 : index
    %c0_207 = arith.constant 0 : index
    %c6_208 = arith.constant 6 : index
    %c0_209 = arith.constant 0 : index
    %119 = vector.load %arg3[%c0_206, %c0_207, %c6_208, %c0_209] : memref<1x4x16x16xf32, #tpu.memory_space<vmem>>, vector<1x4x1x16xf32>
    %120 = vector.shape_cast %119 : vector<1x4x1x16xf32> to vector<4x16xf32>
    %c20_210 = arith.constant 20 : index
    %c48_211 = arith.constant 48 : index
    %121 = vector.load %arg5[%c20_210, %c48_211] : memref<40x128xf32, #tpu.memory_space<vmem>>, vector<4x16xf32>
    tpu.vector_store %arg5[%c20_210, %c48_211], %120 {strides = array<i32>} : memref<40x128xf32, #tpu.memory_space<vmem>>, vector<4x16xf32>,
    %c0_212 = arith.constant 0 : index
    %c0_213 = arith.constant 0 : index
    %c8_214 = arith.constant 8 : index
    %c0_215 = arith.constant 0 : index
    %122 = vector.load %arg3[%c0_212, %c0_213, %c8_214, %c0_215] : memref<1x4x16x16xf32, #tpu.memory_space<vmem>>, vector<1x4x1x16xf32>
    %123 = vector.shape_cast %122 : vector<1x4x1x16xf32> to vector<4x16xf32>
    %c20_216 = arith.constant 20 : index
    %c64_217 = arith.constant 64 : index
    %124 = vector.load %arg5[%c20_216, %c64_217] : memref<40x128xf32, #tpu.memory_space<vmem>>, vector<4x16xf32>
    tpu.vector_store %arg5[%c20_216, %c64_217], %123 {strides = array<i32>} : memref<40x128xf32, #tpu.memory_space<vmem>>, vector<4x16xf32>,
    %c0_218 = arith.constant 0 : index
    %c0_219 = arith.constant 0 : index
    %c10_220 = arith.constant 10 : index
    %c0_221 = arith.constant 0 : index
    %125 = vector.load %arg3[%c0_218, %c0_219, %c10_220, %c0_221] : memref<1x4x16x16xf32, #tpu.memory_space<vmem>>, vector<1x4x1x16xf32>
    %126 = vector.shape_cast %125 : vector<1x4x1x16xf32> to vector<4x16xf32>
    %c20_222 = arith.constant 20 : index
    %c80_223 = arith.constant 80 : index
    %127 = vector.load %arg5[%c20_222, %c80_223] : memref<40x128xf32, #tpu.memory_space<vmem>>, vector<4x16xf32>
    tpu.vector_store %arg5[%c20_222, %c80_223], %126 {strides = array<i32>} : memref<40x128xf32, #tpu.memory_space<vmem>>, vector<4x16xf32>,
    %c0_224 = arith.constant 0 : index
    %c0_225 = arith.constant 0 : index
    %c12_226 = arith.constant 12 : index
    %c0_227 = arith.constant 0 : index
    %128 = vector.load %arg3[%c0_224, %c0_225, %c12_226, %c0_227] : memref<1x4x16x16xf32, #tpu.memory_space<vmem>>, vector<1x4x1x16xf32>
    %129 = vector.shape_cast %128 : vector<1x4x1x16xf32> to vector<4x16xf32>
    %c20_228 = arith.constant 20 : index
    %c96_229 = arith.constant 96 : index
    %130 = vector.load %arg5[%c20_228, %c96_229] : memref<40x128xf32, #tpu.memory_space<vmem>>, vector<4x16xf32>
    tpu.vector_store %arg5[%c20_228, %c96_229], %129 {strides = array<i32>} : memref<40x128xf32, #tpu.memory_space<vmem>>, vector<4x16xf32>,
    %c0_230 = arith.constant 0 : index
    %c0_231 = arith.constant 0 : index
    %c14_232 = arith.constant 14 : index
    %c0_233 = arith.constant 0 : index
    %131 = vector.load %arg3[%c0_230, %c0_231, %c14_232, %c0_233] : memref<1x4x16x16xf32, #tpu.memory_space<vmem>>, vector<1x4x1x16xf32>
    %132 = vector.shape_cast %131 : vector<1x4x1x16xf32> to vector<4x16xf32>
    %c20_234 = arith.constant 20 : index
    %c112_235 = arith.constant 112 : index
    %133 = vector.load %arg5[%c20_234, %c112_235] : memref<40x128xf32, #tpu.memory_space<vmem>>, vector<4x16xf32>
    tpu.vector_store %arg5[%c20_234, %c112_235], %132 {strides = array<i32>} : memref<40x128xf32, #tpu.memory_space<vmem>>, vector<4x16xf32>,
    %c0_236 = arith.constant 0 : index
    %c0_237 = arith.constant 0 : index
    %c1_238 = arith.constant 1 : index
    %c0_239 = arith.constant 0 : index
    %134 = vector.load %arg3[%c0_236, %c0_237, %c1_238, %c0_239] : memref<1x4x16x16xf32, #tpu.memory_space<vmem>>, vector<1x4x1x15xf32>
    %135 = vector.shape_cast %134 : vector<1x4x1x15xf32> to vector<4x15xf32>
    %c24 = arith.constant 24 : index
    %c1_240 = arith.constant 1 : index
    %136 = vector.load %arg5[%c24, %c1_240] : memref<40x128xf32, #tpu.memory_space<vmem>>, vector<4x15xf32>
    tpu.vector_store %arg5[%c24, %c1_240], %135 {strides = array<i32>} : memref<40x128xf32, #tpu.memory_space<vmem>>, vector<4x15xf32>,
    %c0_241 = arith.constant 0 : index
    %c0_242 = arith.constant 0 : index
    %c3_243 = arith.constant 3 : index
    %c0_244 = arith.constant 0 : index
    %137 = vector.load %arg3[%c0_241, %c0_242, %c3_243, %c0_244] : memref<1x4x16x16xf32, #tpu.memory_space<vmem>>, vector<1x4x1x15xf32>
    %138 = vector.shape_cast %137 : vector<1x4x1x15xf32> to vector<4x15xf32>
    %c24_245 = arith.constant 24 : index
    %c17_246 = arith.constant 17 : index
    %139 = vector.load %arg5[%c24_245, %c17_246] : memref<40x128xf32, #tpu.memory_space<vmem>>, vector<4x15xf32>
    tpu.vector_store %arg5[%c24_245, %c17_246], %138 {strides = array<i32>} : memref<40x128xf32, #tpu.memory_space<vmem>>, vector<4x15xf32>,
    %c0_247 = arith.constant 0 : index
    %c0_248 = arith.constant 0 : index
    %c5_249 = arith.constant 5 : index
    %c0_250 = arith.constant 0 : index
    %140 = vector.load %arg3[%c0_247, %c0_248, %c5_249, %c0_250] : memref<1x4x16x16xf32, #tpu.memory_space<vmem>>, vector<1x4x1x15xf32>
    %141 = vector.shape_cast %140 : vector<1x4x1x15xf32> to vector<4x15xf32>
    %c24_251 = arith.constant 24 : index
    %c33_252 = arith.constant 33 : index
    %142 = vector.load %arg5[%c24_251, %c33_252] : memref<40x128xf32, #tpu.memory_space<vmem>>, vector<4x15xf32>
    tpu.vector_store %arg5[%c24_251, %c33_252], %141 {strides = array<i32>} : memref<40x128xf32, #tpu.memory_space<vmem>>, vector<4x15xf32>,
    %c0_253 = arith.constant 0 : index
    %c0_254 = arith.constant 0 : index
    %c7_255 = arith.constant 7 : index
    %c0_256 = arith.constant 0 : index
    %143 = vector.load %arg3[%c0_253, %c0_254, %c7_255, %c0_256] : memref<1x4x16x16xf32, #tpu.memory_space<vmem>>, vector<1x4x1x15xf32>
    %144 = vector.shape_cast %143 : vector<1x4x1x15xf32> to vector<4x15xf32>
    %c24_257 = arith.constant 24 : index
    %c49_258 = arith.constant 49 : index
    %145 = vector.load %arg5[%c24_257, %c49_258] : memref<40x128xf32, #tpu.memory_space<vmem>>, vector<4x15xf32>
    tpu.vector_store %arg5[%c24_257, %c49_258], %144 {strides = array<i32>} : memref<40x128xf32, #tpu.memory_space<vmem>>, vector<4x15xf32>,
    %c0_259 = arith.constant 0 : index
    %c0_260 = arith.constant 0 : index
    %c9_261 = arith.constant 9 : index
    %c0_262 = arith.constant 0 : index
    %146 = vector.load %arg3[%c0_259, %c0_260, %c9_261, %c0_262] : memref<1x4x16x16xf32, #tpu.memory_space<vmem>>, vector<1x4x1x15xf32>
    %147 = vector.shape_cast %146 : vector<1x4x1x15xf32> to vector<4x15xf32>
    %c24_263 = arith.constant 24 : index
    %c65_264 = arith.constant 65 : index
    %148 = vector.load %arg5[%c24_263, %c65_264] : memref<40x128xf32, #tpu.memory_space<vmem>>, vector<4x15xf32>
    tpu.vector_store %arg5[%c24_263, %c65_264], %147 {strides = array<i32>} : memref<40x128xf32, #tpu.memory_space<vmem>>, vector<4x15xf32>,
    %c0_265 = arith.constant 0 : index
    %c0_266 = arith.constant 0 : index
    %c11_267 = arith.constant 11 : index
    %c0_268 = arith.constant 0 : index
    %149 = vector.load %arg3[%c0_265, %c0_266, %c11_267, %c0_268] : memref<1x4x16x16xf32, #tpu.memory_space<vmem>>, vector<1x4x1x15xf32>
    %150 = vector.shape_cast %149 : vector<1x4x1x15xf32> to vector<4x15xf32>
    %c24_269 = arith.constant 24 : index
    %c81_270 = arith.constant 81 : index
    %151 = vector.load %arg5[%c24_269, %c81_270] : memref<40x128xf32, #tpu.memory_space<vmem>>, vector<4x15xf32>
    tpu.vector_store %arg5[%c24_269, %c81_270], %150 {strides = array<i32>} : memref<40x128xf32, #tpu.memory_space<vmem>>, vector<4x15xf32>,
    %c0_271 = arith.constant 0 : index
    %c0_272 = arith.constant 0 : index
    %c13_273 = arith.constant 13 : index
    %c0_274 = arith.constant 0 : index
    %152 = vector.load %arg3[%c0_271, %c0_272, %c13_273, %c0_274] : memref<1x4x16x16xf32, #tpu.memory_space<vmem>>, vector<1x4x1x15xf32>
    %153 = vector.shape_cast %152 : vector<1x4x1x15xf32> to vector<4x15xf32>
    %c24_275 = arith.constant 24 : index
    %c97_276 = arith.constant 97 : index
    %154 = vector.load %arg5[%c24_275, %c97_276] : memref<40x128xf32, #tpu.memory_space<vmem>>, vector<4x15xf32>
    tpu.vector_store %arg5[%c24_275, %c97_276], %153 {strides = array<i32>} : memref<40x128xf32, #tpu.memory_space<vmem>>, vector<4x15xf32>,
    %c0_277 = arith.constant 0 : index
    %c0_278 = arith.constant 0 : index
    %c15 = arith.constant 15 : index
    %c0_279 = arith.constant 0 : index
    %155 = vector.load %arg3[%c0_277, %c0_278, %c15, %c0_279] : memref<1x4x16x16xf32, #tpu.memory_space<vmem>>, vector<1x4x1x15xf32>
    %156 = vector.shape_cast %155 : vector<1x4x1x15xf32> to vector<4x15xf32>
    %c24_280 = arith.constant 24 : index
    %c113_281 = arith.constant 113 : index
    %157 = vector.load %arg5[%c24_280, %c113_281] : memref<40x128xf32, #tpu.memory_space<vmem>>, vector<4x15xf32>
    tpu.vector_store %arg5[%c24_280, %c113_281], %156 {strides = array<i32>} : memref<40x128xf32, #tpu.memory_space<vmem>>, vector<4x15xf32>,
    %c0_282 = arith.constant 0 : index
    %c0_283 = arith.constant 0 : index
    %c1_284 = arith.constant 1 : index
    %c0_285 = arith.constant 0 : index
    %158 = vector.load %arg3[%c0_282, %c0_283, %c1_284, %c0_285] : memref<1x4x16x16xf32, #tpu.memory_space<vmem>>, vector<1x4x1x16xf32>
    %159 = vector.shape_cast %158 : vector<1x4x1x16xf32> to vector<4x16xf32>
    %c28 = arith.constant 28 : index
    %c0_286 = arith.constant 0 : index
    %160 = vector.load %arg5[%c28, %c0_286] : memref<40x128xf32, #tpu.memory_space<vmem>>, vector<4x16xf32>
    tpu.vector_store %arg5[%c28, %c0_286], %159 {strides = array<i32>} : memref<40x128xf32, #tpu.memory_space<vmem>>, vector<4x16xf32>,
    %c0_287 = arith.constant 0 : index
    %c0_288 = arith.constant 0 : index
    %c3_289 = arith.constant 3 : index
    %c0_290 = arith.constant 0 : index
    %161 = vector.load %arg3[%c0_287, %c0_288, %c3_289, %c0_290] : memref<1x4x16x16xf32, #tpu.memory_space<vmem>>, vector<1x4x1x16xf32>
    %162 = vector.shape_cast %161 : vector<1x4x1x16xf32> to vector<4x16xf32>
    %c28_291 = arith.constant 28 : index
    %c16_292 = arith.constant 16 : index
    %163 = vector.load %arg5[%c28_291, %c16_292] : memref<40x128xf32, #tpu.memory_space<vmem>>, vector<4x16xf32>
    tpu.vector_store %arg5[%c28_291, %c16_292], %162 {strides = array<i32>} : memref<40x128xf32, #tpu.memory_space<vmem>>, vector<4x16xf32>,
    %c0_293 = arith.constant 0 : index
    %c0_294 = arith.constant 0 : index
    %c5_295 = arith.constant 5 : index
    %c0_296 = arith.constant 0 : index
    %164 = vector.load %arg3[%c0_293, %c0_294, %c5_295, %c0_296] : memref<1x4x16x16xf32, #tpu.memory_space<vmem>>, vector<1x4x1x16xf32>
    %165 = vector.shape_cast %164 : vector<1x4x1x16xf32> to vector<4x16xf32>
    %c28_297 = arith.constant 28 : index
    %c32_298 = arith.constant 32 : index
    %166 = vector.load %arg5[%c28_297, %c32_298] : memref<40x128xf32, #tpu.memory_space<vmem>>, vector<4x16xf32>
    tpu.vector_store %arg5[%c28_297, %c32_298], %165 {strides = array<i32>} : memref<40x128xf32, #tpu.memory_space<vmem>>, vector<4x16xf32>,
    %c0_299 = arith.constant 0 : index
    %c0_300 = arith.constant 0 : index
    %c7_301 = arith.constant 7 : index
    %c0_302 = arith.constant 0 : index
    %167 = vector.load %arg3[%c0_299, %c0_300, %c7_301, %c0_302] : memref<1x4x16x16xf32, #tpu.memory_space<vmem>>, vector<1x4x1x16xf32>
    %168 = vector.shape_cast %167 : vector<1x4x1x16xf32> to vector<4x16xf32>
    %c28_303 = arith.constant 28 : index
    %c48_304 = arith.constant 48 : index
    %169 = vector.load %arg5[%c28_303, %c48_304] : memref<40x128xf32, #tpu.memory_space<vmem>>, vector<4x16xf32>
    tpu.vector_store %arg5[%c28_303, %c48_304], %168 {strides = array<i32>} : memref<40x128xf32, #tpu.memory_space<vmem>>, vector<4x16xf32>,
    %c0_305 = arith.constant 0 : index
    %c0_306 = arith.constant 0 : index
    %c9_307 = arith.constant 9 : index
    %c0_308 = arith.constant 0 : index
    %170 = vector.load %arg3[%c0_305, %c0_306, %c9_307, %c0_308] : memref<1x4x16x16xf32, #tpu.memory_space<vmem>>, vector<1x4x1x16xf32>
    %171 = vector.shape_cast %170 : vector<1x4x1x16xf32> to vector<4x16xf32>
    %c28_309 = arith.constant 28 : index
    %c64_310 = arith.constant 64 : index
    %172 = vector.load %arg5[%c28_309, %c64_310] : memref<40x128xf32, #tpu.memory_space<vmem>>, vector<4x16xf32>
    tpu.vector_store %arg5[%c28_309, %c64_310], %171 {strides = array<i32>} : memref<40x128xf32, #tpu.memory_space<vmem>>, vector<4x16xf32>,
    %c0_311 = arith.constant 0 : index
    %c0_312 = arith.constant 0 : index
    %c11_313 = arith.constant 11 : index
    %c0_314 = arith.constant 0 : index
    %173 = vector.load %arg3[%c0_311, %c0_312, %c11_313, %c0_314] : memref<1x4x16x16xf32, #tpu.memory_space<vmem>>, vector<1x4x1x16xf32>
    %174 = vector.shape_cast %173 : vector<1x4x1x16xf32> to vector<4x16xf32>
    %c28_315 = arith.constant 28 : index
    %c80_316 = arith.constant 80 : index
    %175 = vector.load %arg5[%c28_315, %c80_316] : memref<40x128xf32, #tpu.memory_space<vmem>>, vector<4x16xf32>
    tpu.vector_store %arg5[%c28_315, %c80_316], %174 {strides = array<i32>} : memref<40x128xf32, #tpu.memory_space<vmem>>, vector<4x16xf32>,
    %c0_317 = arith.constant 0 : index
    %c0_318 = arith.constant 0 : index
    %c13_319 = arith.constant 13 : index
    %c0_320 = arith.constant 0 : index
    %176 = vector.load %arg3[%c0_317, %c0_318, %c13_319, %c0_320] : memref<1x4x16x16xf32, #tpu.memory_space<vmem>>, vector<1x4x1x16xf32>
    %177 = vector.shape_cast %176 : vector<1x4x1x16xf32> to vector<4x16xf32>
    %c28_321 = arith.constant 28 : index
    %c96_322 = arith.constant 96 : index
    %178 = vector.load %arg5[%c28_321, %c96_322] : memref<40x128xf32, #tpu.memory_space<vmem>>, vector<4x16xf32>
    tpu.vector_store %arg5[%c28_321, %c96_322], %177 {strides = array<i32>} : memref<40x128xf32, #tpu.memory_space<vmem>>, vector<4x16xf32>,
    %c0_323 = arith.constant 0 : index
    %c0_324 = arith.constant 0 : index
    %c15_325 = arith.constant 15 : index
    %c0_326 = arith.constant 0 : index
    %179 = vector.load %arg3[%c0_323, %c0_324, %c15_325, %c0_326] : memref<1x4x16x16xf32, #tpu.memory_space<vmem>>, vector<1x4x1x16xf32>
    %180 = vector.shape_cast %179 : vector<1x4x1x16xf32> to vector<4x16xf32>
    %c28_327 = arith.constant 28 : index
    %c112_328 = arith.constant 112 : index
    %181 = vector.load %arg5[%c28_327, %c112_328] : memref<40x128xf32, #tpu.memory_space<vmem>>, vector<4x16xf32>
    tpu.vector_store %arg5[%c28_327, %c112_328], %180 {strides = array<i32>} : memref<40x128xf32, #tpu.memory_space<vmem>>, vector<4x16xf32>,
    %c0_329 = arith.constant 0 : index
    %c0_330 = arith.constant 0 : index
    %c2_331 = arith.constant 2 : index
    %c0_332 = arith.constant 0 : index
    %182 = vector.load %arg3[%c0_329, %c0_330, %c2_331, %c0_332] : memref<1x4x16x16xf32, #tpu.memory_space<vmem>>, vector<1x4x1x15xf32>
    %183 = vector.shape_cast %182 : vector<1x4x1x15xf32> to vector<4x15xf32>
    %c32_333 = arith.constant 32 : index
    %c1_334 = arith.constant 1 : index
    %184 = vector.load %arg5[%c32_333, %c1_334] : memref<40x128xf32, #tpu.memory_space<vmem>>, vector<4x15xf32>
    tpu.vector_store %arg5[%c32_333, %c1_334], %183 {strides = array<i32>} : memref<40x128xf32, #tpu.memory_space<vmem>>, vector<4x15xf32>,
    %c0_335 = arith.constant 0 : index
    %c0_336 = arith.constant 0 : index
    %c4_337 = arith.constant 4 : index
    %c0_338 = arith.constant 0 : index
    %185 = vector.load %arg3[%c0_335, %c0_336, %c4_337, %c0_338] : memref<1x4x16x16xf32, #tpu.memory_space<vmem>>, vector<1x4x1x15xf32>
    %186 = vector.shape_cast %185 : vector<1x4x1x15xf32> to vector<4x15xf32>
    %c32_339 = arith.constant 32 : index
    %c17_340 = arith.constant 17 : index
    %187 = vector.load %arg5[%c32_339, %c17_340] : memref<40x128xf32, #tpu.memory_space<vmem>>, vector<4x15xf32>
    tpu.vector_store %arg5[%c32_339, %c17_340], %186 {strides = array<i32>} : memref<40x128xf32, #tpu.memory_space<vmem>>, vector<4x15xf32>,
    %c0_341 = arith.constant 0 : index
    %c0_342 = arith.constant 0 : index
    %c6_343 = arith.constant 6 : index
    %c0_344 = arith.constant 0 : index
    %188 = vector.load %arg3[%c0_341, %c0_342, %c6_343, %c0_344] : memref<1x4x16x16xf32, #tpu.memory_space<vmem>>, vector<1x4x1x15xf32>
    %189 = vector.shape_cast %188 : vector<1x4x1x15xf32> to vector<4x15xf32>
    %c32_345 = arith.constant 32 : index
    %c33_346 = arith.constant 33 : index
    %190 = vector.load %arg5[%c32_345, %c33_346] : memref<40x128xf32, #tpu.memory_space<vmem>>, vector<4x15xf32>
    tpu.vector_store %arg5[%c32_345, %c33_346], %189 {strides = array<i32>} : memref<40x128xf32, #tpu.memory_space<vmem>>, vector<4x15xf32>,
    %c0_347 = arith.constant 0 : index
    %c0_348 = arith.constant 0 : index
    %c8_349 = arith.constant 8 : index
    %c0_350 = arith.constant 0 : index
    %191 = vector.load %arg3[%c0_347, %c0_348, %c8_349, %c0_350] : memref<1x4x16x16xf32, #tpu.memory_space<vmem>>, vector<1x4x1x15xf32>
    %192 = vector.shape_cast %191 : vector<1x4x1x15xf32> to vector<4x15xf32>
    %c32_351 = arith.constant 32 : index
    %c49_352 = arith.constant 49 : index
    %193 = vector.load %arg5[%c32_351, %c49_352] : memref<40x128xf32, #tpu.memory_space<vmem>>, vector<4x15xf32>
    tpu.vector_store %arg5[%c32_351, %c49_352], %192 {strides = array<i32>} : memref<40x128xf32, #tpu.memory_space<vmem>>, vector<4x15xf32>,
    %c0_353 = arith.constant 0 : index
    %c0_354 = arith.constant 0 : index
    %c10_355 = arith.constant 10 : index
    %c0_356 = arith.constant 0 : index
    %194 = vector.load %arg3[%c0_353, %c0_354, %c10_355, %c0_356] : memref<1x4x16x16xf32, #tpu.memory_space<vmem>>, vector<1x4x1x15xf32>
    %195 = vector.shape_cast %194 : vector<1x4x1x15xf32> to vector<4x15xf32>
    %c32_357 = arith.constant 32 : index
    %c65_358 = arith.constant 65 : index
    %196 = vector.load %arg5[%c32_357, %c65_358] : memref<40x128xf32, #tpu.memory_space<vmem>>, vector<4x15xf32>
    tpu.vector_store %arg5[%c32_357, %c65_358], %195 {strides = array<i32>} : memref<40x128xf32, #tpu.memory_space<vmem>>, vector<4x15xf32>,
    %c0_359 = arith.constant 0 : index
    %c0_360 = arith.constant 0 : index
    %c12_361 = arith.constant 12 : index
    %c0_362 = arith.constant 0 : index
    %197 = vector.load %arg3[%c0_359, %c0_360, %c12_361, %c0_362] : memref<1x4x16x16xf32, #tpu.memory_space<vmem>>, vector<1x4x1x15xf32>
    %198 = vector.shape_cast %197 : vector<1x4x1x15xf32> to vector<4x15xf32>
    %c32_363 = arith.constant 32 : index
    %c81_364 = arith.constant 81 : index
    %199 = vector.load %arg5[%c32_363, %c81_364] : memref<40x128xf32, #tpu.memory_space<vmem>>, vector<4x15xf32>
    tpu.vector_store %arg5[%c32_363, %c81_364], %198 {strides = array<i32>} : memref<40x128xf32, #tpu.memory_space<vmem>>, vector<4x15xf32>,
    %c0_365 = arith.constant 0 : index
    %c0_366 = arith.constant 0 : index
    %c14_367 = arith.constant 14 : index
    %c0_368 = arith.constant 0 : index
    %200 = vector.load %arg3[%c0_365, %c0_366, %c14_367, %c0_368] : memref<1x4x16x16xf32, #tpu.memory_space<vmem>>, vector<1x4x1x15xf32>
    %201 = vector.shape_cast %200 : vector<1x4x1x15xf32> to vector<4x15xf32>
    %c32_369 = arith.constant 32 : index
    %c97_370 = arith.constant 97 : index
    %202 = vector.load %arg5[%c32_369, %c97_370] : memref<40x128xf32, #tpu.memory_space<vmem>>, vector<4x15xf32>
    tpu.vector_store %arg5[%c32_369, %c97_370], %201 {strides = array<i32>} : memref<40x128xf32, #tpu.memory_space<vmem>>, vector<4x15xf32>,
    %c0_371 = arith.constant 0 : index
    %c0_372 = arith.constant 0 : index
    %c2_373 = arith.constant 2 : index
    %c0_374 = arith.constant 0 : index
    %203 = vector.load %arg3[%c0_371, %c0_372, %c2_373, %c0_374] : memref<1x4x16x16xf32, #tpu.memory_space<vmem>>, vector<1x4x1x16xf32>
    %204 = vector.shape_cast %203 : vector<1x4x1x16xf32> to vector<4x16xf32>
    %c36 = arith.constant 36 : index
    %c0_375 = arith.constant 0 : index
    %205 = vector.load %arg5[%c36, %c0_375] : memref<40x128xf32, #tpu.memory_space<vmem>>, vector<4x16xf32>
    tpu.vector_store %arg5[%c36, %c0_375], %204 {strides = array<i32>} : memref<40x128xf32, #tpu.memory_space<vmem>>, vector<4x16xf32>,
    %c0_376 = arith.constant 0 : index
    %c0_377 = arith.constant 0 : index
    %c4_378 = arith.constant 4 : index
    %c0_379 = arith.constant 0 : index
    %206 = vector.load %arg3[%c0_376, %c0_377, %c4_378, %c0_379] : memref<1x4x16x16xf32, #tpu.memory_space<vmem>>, vector<1x4x1x16xf32>
    %207 = vector.shape_cast %206 : vector<1x4x1x16xf32> to vector<4x16xf32>
    %c36_380 = arith.constant 36 : index
    %c16_381 = arith.constant 16 : index
    %208 = vector.load %arg5[%c36_380, %c16_381] : memref<40x128xf32, #tpu.memory_space<vmem>>, vector<4x16xf32>
    tpu.vector_store %arg5[%c36_380, %c16_381], %207 {strides = array<i32>} : memref<40x128xf32, #tpu.memory_space<vmem>>, vector<4x16xf32>,
    %c0_382 = arith.constant 0 : index
    %c0_383 = arith.constant 0 : index
    %c6_384 = arith.constant 6 : index
    %c0_385 = arith.constant 0 : index
    %209 = vector.load %arg3[%c0_382, %c0_383, %c6_384, %c0_385] : memref<1x4x16x16xf32, #tpu.memory_space<vmem>>, vector<1x4x1x16xf32>
    %210 = vector.shape_cast %209 : vector<1x4x1x16xf32> to vector<4x16xf32>
    %c36_386 = arith.constant 36 : index
    %c32_387 = arith.constant 32 : index
    %211 = vector.load %arg5[%c36_386, %c32_387] : memref<40x128xf32, #tpu.memory_space<vmem>>, vector<4x16xf32>
    tpu.vector_store %arg5[%c36_386, %c32_387], %210 {strides = array<i32>} : memref<40x128xf32, #tpu.memory_space<vmem>>, vector<4x16xf32>,
    %c0_388 = arith.constant 0 : index
    %c0_389 = arith.constant 0 : index
    %c8_390 = arith.constant 8 : index
    %c0_391 = arith.constant 0 : index
    %212 = vector.load %arg3[%c0_388, %c0_389, %c8_390, %c0_391] : memref<1x4x16x16xf32, #tpu.memory_space<vmem>>, vector<1x4x1x16xf32>
    %213 = vector.shape_cast %212 : vector<1x4x1x16xf32> to vector<4x16xf32>
    %c36_392 = arith.constant 36 : index
    %c48_393 = arith.constant 48 : index
    %214 = vector.load %arg5[%c36_392, %c48_393] : memref<40x128xf32, #tpu.memory_space<vmem>>, vector<4x16xf32>
    tpu.vector_store %arg5[%c36_392, %c48_393], %213 {strides = array<i32>} : memref<40x128xf32, #tpu.memory_space<vmem>>, vector<4x16xf32>,
    %c0_394 = arith.constant 0 : index
    %c0_395 = arith.constant 0 : index
    %c10_396 = arith.constant 10 : index
    %c0_397 = arith.constant 0 : index
    %215 = vector.load %arg3[%c0_394, %c0_395, %c10_396, %c0_397] : memref<1x4x16x16xf32, #tpu.memory_space<vmem>>, vector<1x4x1x16xf32>
    %216 = vector.shape_cast %215 : vector<1x4x1x16xf32> to vector<4x16xf32>
    %c36_398 = arith.constant 36 : index
    %c64_399 = arith.constant 64 : index
    %217 = vector.load %arg5[%c36_398, %c64_399] : memref<40x128xf32, #tpu.memory_space<vmem>>, vector<4x16xf32>
    tpu.vector_store %arg5[%c36_398, %c64_399], %216 {strides = array<i32>} : memref<40x128xf32, #tpu.memory_space<vmem>>, vector<4x16xf32>,
    %c0_400 = arith.constant 0 : index
    %c0_401 = arith.constant 0 : index
    %c12_402 = arith.constant 12 : index
    %c0_403 = arith.constant 0 : index
    %218 = vector.load %arg3[%c0_400, %c0_401, %c12_402, %c0_403] : memref<1x4x16x16xf32, #tpu.memory_space<vmem>>, vector<1x4x1x16xf32>
    %219 = vector.shape_cast %218 : vector<1x4x1x16xf32> to vector<4x16xf32>
    %c36_404 = arith.constant 36 : index
    %c80_405 = arith.constant 80 : index
    %220 = vector.load %arg5[%c36_404, %c80_405] : memref<40x128xf32, #tpu.memory_space<vmem>>, vector<4x16xf32>
    tpu.vector_store %arg5[%c36_404, %c80_405], %219 {strides = array<i32>} : memref<40x128xf32, #tpu.memory_space<vmem>>, vector<4x16xf32>,
    %c0_406 = arith.constant 0 : index
    %c0_407 = arith.constant 0 : index
    %c14_408 = arith.constant 14 : index
    %c0_409 = arith.constant 0 : index
    %221 = vector.load %arg3[%c0_406, %c0_407, %c14_408, %c0_409] : memref<1x4x16x16xf32, #tpu.memory_space<vmem>>, vector<1x4x1x16xf32>
    %222 = vector.shape_cast %221 : vector<1x4x1x16xf32> to vector<4x16xf32>
    %c36_410 = arith.constant 36 : index
    %c96_411 = arith.constant 96 : index
    %223 = vector.load %arg5[%c36_410, %c96_411] : memref<40x128xf32, #tpu.memory_space<vmem>>, vector<4x16xf32>
    tpu.vector_store %arg5[%c36_410, %c96_411], %222 {strides = array<i32>} : memref<40x128xf32, #tpu.memory_space<vmem>>, vector<4x16xf32>,
    %c0_412 = arith.constant 0 : index
    %c0_413 = arith.constant 0 : index
    %224 = vector.load %arg1[%c0_412, %c0_413] : memref<8x40xf32, #tpu.memory_space<vmem>>, vector<8x40xf32>
    %c0_414 = arith.constant 0 : index
    %c0_415 = arith.constant 0 : index
    %225 = vector.load %arg5[%c0_414, %c0_415] : memref<40x128xf32, #tpu.memory_space<vmem>>, vector<40x128xf32>
    %cst_416 = arith.constant dense<0.000000e+00> : vector<8x128xf32>
    %226 = tpu.matmul %224, %225, %cst_416 {dimension_numbers = #tpu.dot_dimension_numbers<[1], [0], [0], [1], [0, 0, 1, 1], [], []>} : vector<8x40xf32>, vector<40x128xf32>, vector<8x128xf32> -> vector<8x128xf32>
    %c0_417 = arith.constant 0 : index
    %c0_418 = arith.constant 0 : index
    %227 = vector.load %arg2[%c0_417, %c0_418] : memref<8x1xf32, #tpu.memory_space<vmem>>, vector<8x1xf32>
    %228 = vector.broadcast %227 : vector<8x1xf32> to vector<8x128xf32>
    %229 = arith.addf %226, %228 : vector<8x128xf32>
    %230 = vector.shape_cast %229 : vector<8x128xf32> to vector<1x8x128xf32>
    %c0_419 = arith.constant 0 : index
    %c0_420 = arith.constant 0 : index
    %c0_421 = arith.constant 0 : index
    %231 = vector.load %arg4[%c0_419, %c0_420, %c0_421] : memref<1x8x128xf32, #tpu.memory_space<vmem>>, vector<1x8x128xf32>
    tpu.vector_store %arg4[%c0_419, %c0_420, %c0_421], %230 {strides = array<i32>} : memref<1x8x128xf32, #tpu.memory_space<vmem>>, vector<1x8x128xf32>,
    return
  }
  func.func @transform_0(%arg0: i32) -> (i32, i32) {
    %c0_i32 = arith.constant 0 : i32
    %c0_i32_0 = arith.constant 0 : i32
    %c0_i32_1 = arith.constant 0 : i32
    return %c0_i32, %c0_i32_0 : i32, i32
  }
  func.func @transform_1(%arg0: i32) -> (i32, i32) {
    %c0_i32 = arith.constant 0 : i32
    %c0_i32_0 = arith.constant 0 : i32
    %c0_i32_1 = arith.constant 0 : i32
    return %c0_i32, %c0_i32_0 : i32, i32
  }
  func.func @transform_2(%arg0: i32) -> (i32, i32, i32, i32) {
    %c0_i32 = arith.constant 0 : i32
    %c0_i32_0 = arith.constant 0 : i32
    %c0_i32_1 = arith.constant 0 : i32
    %c0_i32_2 = arith.constant 0 : i32
    return %arg0, %c0_i32, %c0_i32_0, %c0_i32_1 : i32, i32, i32, i32
  }
  func.func @transform_3(%arg0: i32) -> (i32, i32, i32) {
    %c0_i32 = arith.constant 0 : i32
    %c0_i32_0 = arith.constant 0 : i32
    %c0_i32_1 = arith.constant 0 : i32
    return %arg0, %c0_i32, %c0_i32_0 : i32, i32, i32
  }
}

</mosaic_0001>

<llo_original>
// kernel: tpu_custom_call.1
$region0: #{tpu_custom_call.1}
  #allocation0 [shape = 'u32[]', space=smem, size = 0x4, offset = 0x4, fixed_abs, tag = 'smem constant byte address 0x4 - core index']
  #allocation1 [shape = 'u32[144,128]{1,0:T(1,128)}', space=vmem, size = 0x12000, scoped, tag = 'internal scratch']
  #allocation2 [shape = 'f32[40,128]{1,0:T(8,128)}', space=vmem, size = 0x5000, scoped, tag = 'scratch operand']
  %s0 = inlined_call_operand.vmem [shape: f32[8,40], index: 0, kind: input, shape index: {}]
  %s1 = inlined_call_operand.vmem [shape: f32[8,1], index: 1, kind: input, shape index: {}]
  %s2 = inlined_call_operand.hbm [shape: f32[2,4,16,16], index: 2, kind: input, shape index: {}]
  %s3 = inlined_call_operand.hbm [shape: f32[2,8,128], index: 3, kind: output, shape index: {}]
  %s4 = sld [smem:[#allocation0]]
  $region49: #{tpu_custom_call.1} parent=0
    _
  %s6 = ssub.s32 1, %s4
  %s7 = scalar_select 0, %s6, %s4
  $region1: #{tpu_custom_call.1} parent=0
    #allocation3 [shape = 'u8[65536]{0}', space=vmem, size = 0x10000, scoped, tag = 'input window, operand 2']
    #allocation4 [shape = 's32[2]{0}', space=sflag, size = 0x8, scoped, tag = 'scoped memory for tpu_custom_call.1']
    #allocation5 [shape = 's32[2]{0}', space=sflag, size = 0x8, scoped, tag = 'scoped memory for tpu_custom_call.1']
    #allocation6 [shape = 'u8[8192]{0}', space=vmem, size = 0x2000, scoped, tag = 'output window, operand 0']
    %8 = vsyncpa [#allocation4], 0
    %s9 = scalar_lea.sflag [#allocation4], 1
    %10 = vsyncpa %s9, 0
    %11 = vsyncpa [#allocation5], 0
    %s12 = scalar_lea.sflag [#allocation5], 1
    %13 = vsyncpa %s12, 0
    loop: start=0, step=1, limit=4
    $region2: #{tpu_custom_call.1} parent=1 // loop_pre_header
      _
    $region3: #{tpu_custom_call.1} parent=1 // loop_header
      %s15 = sphi 0, %s19
      %p16 = scmp.ge.s32.totalorder %s15, 4
      %s23 = sphi 0, %s23
      %s25 = sphi 0, %s23
      %s26 = sphi 0, %s25
      %s40 = sphi 0, %s26
      %s44 = sphi 0, %s44
      %s46 = sphi 0, %s44
      %s47 = sphi 0, %s46
      %s61 = sphi 0, %s47
      %s67 = sphi 0, %s69
      %s70 = sphi 0, %s67
      %s71 = sphi 0, %s70
      %s87 = sphi 0, %s71
      %s93 = sphi 0, %s95
      %s96 = sphi 0, %s93
      %s97 = sphi 0, %s96
      %s113 = sphi 0, %s97
    $region4: #{tpu_custom_call.1} parent=1 // loop_header_branch
      %18 = sbr.rel (%p16) target = $region8
    $region5: #{tpu_custom_call.1} parent=1 // loop_body
      %s20 = ssub.s32 %s15, 1
      %s21 = ssub.s32 %s15, 2
      %s22 = sadd.s32 %s15, 1
      %s24 = sadd.s32 %s23, 1
      %p27 = scmp.eq.s32.totalorder %s15, 1
      %p28 = scmp.ne.s32.totalorder %s23, %s25
      %p29 = scmp.eq.s32.totalorder %s15, 0
      %p30 = por %p28, %p29
      %p31 = scmp.ne.s32.totalorder %s23, %s25
      %p32 = scmp.eq.s32.totalorder %s20, 1
      %p33 = por %p31, %p32
      %p34 = scmp.ne.s32.totalorder %s25, %s26
      %p35 = scmp.eq.s32.totalorder %s20, 0
      %p36 = por %p34, %p35
      %p37 = scmp.ne.s32.totalorder %s25, %s26
      %p38 = scmp.eq.s32.totalorder %s21, 1
      %p39 = por %p37, %p38
      %p41 = scmp.ne.s32.totalorder %s26, %s40
      %p42 = scmp.eq.s32.totalorder %s21, 0
      %p43 = por %p41, %p42
      %s45 = sadd.s32 %s44, 1
      %p48 = scmp.eq.s32.totalorder %s15, 1
      %p49 = scmp.ne.s32.totalorder %s44, %s46
      %p50 = scmp.eq.s32.totalorder %s15, 0
      %p51 = por %p49, %p50
      %p52 = scmp.ne.s32.totalorder %s44, %s46
      %p53 = scmp.eq.s32.totalorder %s20, 1
      %p54 = por %p52, %p53
      %p55 = scmp.ne.s32.totalorder %s46, %s47
      %p56 = scmp.eq.s32.totalorder %s20, 0
      %p57 = por %p55, %p56
      %p58 = scmp.ne.s32.totalorder %s46, %s47
      %p59 = scmp.eq.s32.totalorder %s21, 1
      %p60 = por %p58, %p59
      %p62 = scmp.ne.s32.totalorder %s47, %s61
      %p63 = scmp.eq.s32.totalorder %s21, 0
      %p64 = por %p62, %p63
      %s65 = ssub.s32 %s15, %s22
      %p66 = scmp.eq.s32.totalorder %s65, 0
      %s68 = sadd.s32 %s67, 1
      %s69 = scalar_select %p66, %s67, %s68
      %p72 = pneg %p66
      %p73 = scmp.eq.s32.totalorder %s15, 1
      %p74 = por %p72, %p73
      %p75 = scmp.ne.s32.totalorder %s67, %s70
      %p76 = scmp.eq.s32.totalorder %s15, 0
      %p77 = por %p75, %p76
      %p78 = scmp.ne.s32.totalorder %s67, %s70
      %p79 = scmp.eq.s32.totalorder %s20, 1
      %p80 = por %p78, %p79
      %p81 = scmp.ne.s32.totalorder %s70, %s71
      %p82 = scmp.eq.s32.totalorder %s20, 0
      %p83 = por %p81, %p82
      %p84 = scmp.ne.s32.totalorder %s70, %s71
      %p85 = scmp.eq.s32.totalorder %s21, 1
      %p86 = por %p84, %p85
      %p88 = scmp.ne.s32.totalorder %s71, %s87
      %p89 = scmp.eq.s32.totalorder %s21, 0
      %p90 = por %p88, %p89
      %s91 = ssub.s32 %s15, %s22
      %p92 = scmp.eq.s32.totalorder %s91, 0
      %s94 = sadd.s32 %s93, 1
      %s95 = scalar_select %p92, %s93, %s94
      %p98 = pneg %p92
      %p99 = scmp.eq.s32.totalorder %s15, 1
      %p100 = por %p98, %p99
      %p101 = scmp.ne.s32.totalorder %s93, %s96
      %p102 = scmp.eq.s32.totalorder %s15, 0
      %p103 = por %p101, %p102
      %p104 = scmp.ne.s32.totalorder %s93, %s96
      %p105 = scmp.eq.s32.totalorder %s20, 1
      %p106 = por %p104, %p105
      %p107 = scmp.ne.s32.totalorder %s96, %s97
      %p108 = scmp.eq.s32.totalorder %s20, 0
      %p109 = por %p107, %p108
      %p110 = scmp.ne.s32.totalorder %s96, %s97
      %p111 = scmp.eq.s32.totalorder %s21, 1
      %p112 = por %p110, %p111
      %p114 = scmp.ne.s32.totalorder %s97, %s113
      %p115 = scmp.eq.s32.totalorder %s21, 0
      %p116 = por %p114, %p115
      %p117 = scmp.le.s32.totalorder 1, %s15
      %p118 = scmp.lt.s32.totalorder %s15, 3
      %p119 = pnand %p117, %p118
      %p120 = pneg %p119
      // Predicated region
      $region9: #{tpu_custom_call.1} parent=5 // pred_check
        _
      $region10: #{tpu_custom_call.1} parent=5 // pred_check_branch
        %122 = sbr.rel (%p119) target = $region12
      $region11: #{tpu_custom_call.1} parent=5 // pred_region
        %s123 = ssub.s32 %s15, 1
        // Predicated region
        $region13: #{tpu_custom_call.1} parent=11 // pred_check
          %p124 = pneg %p36
        $region14: #{tpu_custom_call.1} parent=11 // pred_check_branch
          %126 = sbr.rel (%p124) target = $region16
        $region15: #{tpu_custom_call.1} parent=11 // pred_region
          _
        $region16: #{tpu_custom_call.1} parent=11 // pred_fallthru
          _
        // Predicated region
        $region17: #{tpu_custom_call.1} parent=11 // pred_check
          %p127 = pneg %p57
        $region18: #{tpu_custom_call.1} parent=11 // pred_check_branch
          %129 = sbr.rel (%p127) target = $region20
        $region19: #{tpu_custom_call.1} parent=11 // pred_region
          _
        $region20: #{tpu_custom_call.1} parent=11 // pred_fallthru
          _
      $region12: #{tpu_custom_call.1} parent=5 // pred_fallthru
        _
      %p130 = scmp.lt.s32.totalorder %s15, 2
      // Predicated region
      $region21: #{tpu_custom_call.1} parent=5 // pred_check
        %p131 = pneg %p130
      $region22: #{tpu_custom_call.1} parent=5 // pred_check_branch
        %133 = sbr.rel (%p131) target = $region24
      $region23: #{tpu_custom_call.1} parent=5 // pred_region
        // Predicated region
        $region25: #{tpu_custom_call.1} parent=23 // pred_check
          %p134 = pneg %p77
        $region26: #{tpu_custom_call.1} parent=23 // pred_check_branch
          %136 = sbr.rel (%p134) target = $region28
        $region27: #{tpu_custom_call.1} parent=23 // pred_region
          %s137 = sand.u32 %s67, 1
          %s138 = scalar_lea.sflag [#allocation4], %s137
          %s139 = sand.u32 %s67, 1
          %s140 = smul.addr %s139, 64
          %s141 = scalar_lea.vmem [#allocation3], %s140
          %s143 = ssub.s32 1024, 1024
          %144 = vsyncadd %s138, %s143
          %s145 = smul.addr %s15, 8
          %s146 = smul.addr %s145, 128
          %s147 = scalar_lea.hbm %s2, %s146
          %s148 = sshll.u32 %s141, 4
          %s149 = int_to_ptr.vmem [resolvable:$true] %s148
          %154 = dma.hbm_to_vmem [thread:$0]  %s147, 1024, %s149, %s138, 128, 128, 8
        $region28: #{tpu_custom_call.1} parent=23 // pred_fallthru
          _
      $region24: #{tpu_custom_call.1} parent=5 // pred_fallthru
        _
      %p155 = scmp.le.s32.totalorder 1, %s15
      %p156 = scmp.lt.s32.totalorder %s15, 3
      %p157 = pnand %p155, %p156
      %p158 = pneg %p157
      // Predicated region
      $region29: #{tpu_custom_call.1} parent=5 // pred_check
        _
      $region30: #{tpu_custom_call.1} parent=5 // pred_check_branch
        %160 = sbr.rel (%p157) target = $region32
      $region31: #{tpu_custom_call.1} parent=5 // pred_region
        %s161 = ssub.s32 %s15, 1
        %s162 = sand.u32 %s70, 1
        %s163 = scalar_lea.sflag [#allocation4], %s162
        %s164 = sand.u32 %s70, 1
        %s165 = smul.addr %s164, 64
        %s166 = scalar_lea.vmem [#allocation3], %s165
        // Predicated region
        $region33: #{tpu_custom_call.1} parent=31 // pred_check
          %p167 = pneg %p83
        $region34: #{tpu_custom_call.1} parent=31 // pred_check_branch
          %169 = sbr.rel (%p167) target = $region36
        $region35: #{tpu_custom_call.1} parent=31 // pred_region
          %170 = dma.done %s163, 1024
        $region36: #{tpu_custom_call.1} parent=31 // pred_fallthru
          _
        %p171 = pneg %p36
        %p172 = pneg %p33
        %p173 = pneg %p57
        %p174 = pneg %p54
        %s175 = sand.u32 %s70, 1
        %s176 = scalar_lea.sflag [#allocation4], %s175
        %s177 = sand.u32 %s70, 1
        %s178 = smul.addr %s177, 64
        %s179 = scalar_lea.vmem [#allocation3], %s178
        %p180 = pneg %p83
        %p181 = pneg %p80
        %p182 = pneg %p109
        %p183 = pneg %p106
        %s184 = sand.u32 %s96, 1
        %s185 = scalar_lea.sflag [#allocation5], %s184
        %s186 = sand.u32 %s96, 1
        %s187 = smul.addr %s186, 8
        %s188 = scalar_lea.vmem [#allocation6], %s187
        %189 = vst [vmem:[#allocation2] sm:$0xff] 0.0
        %190 = vst [vmem:[#allocation2 + $0x8] sm:$0xff] 0.0
        %191 = vst [vmem:[#allocation2 + $0x10] sm:$0xff] 0.0
        %192 = vst [vmem:[#allocation2 + $0x18] sm:$0xff] 0.0
        %193 = vst [vmem:[#allocation2 + $0x20] sm:$0xff] 0.0
        %v194 = vld [vmem:[%s166] sm:$0x1]
        %v195 = vld [vmem:[%s166 + $0x10] sm:$0x1]
        %v196 = vld [vmem:[%s166 + $0x20] sm:$0x1]
        %v197 = vld [vmem:[%s166 + $0x30] sm:$0x1]
        %v202 = vrot.slane %v195, 7
        %vm203 = vcmask 1041409
        %v204 = vsel %vm203, %v202, %v194
        %v205 = vrot.slane %v196, 6
        %vm206 = vcmask 1042434
        %v207 = vsel %vm206, %v205, %v204
        %v208 = vrot.slane %v197, 5
        %vm209 = vcmask 1043459
        %v210 = vsel %vm209, %v208, %v207
        %211 = vrot.lane.b32.xlu0 %v210, 17
        %v212 = vpop.permute.xlu0 %211
        %vm214 = vcmask 257160
        %215 = vst.msk [vmem:[#allocation2] sm:$0xf] %vm214, %v212
        %v216 = vld [vmem:[%s166 + $0x2] sm:$0x1]
        %v217 = vld [vmem:[%s166 + $0x12] sm:$0x1]
        %v218 = vld [vmem:[%s166 + $0x22] sm:$0x1]
        %v219 = vld [vmem:[%s166 + $0x32] sm:$0x1]
        %v224 = vrot.slane %v217, 7
        %v225 = vsel %vm203, %v224, %v216
        %v226 = vrot.slane %v218, 6
        %v227 = vsel %vm206, %v226, %v225
        %v228 = vrot.slane %v219, 5
        %v229 = vsel %vm209, %v228, %v227
        %230 = vrot.lane.b32.xlu0 %v229, 33
        %v231 = vpop.permute.xlu0 %230
        %vm233 = vcmask 388360
        %234 = vst.msk [vmem:[#allocation2] sm:$0xf] %vm233, %v231
        %v235 = vld [vmem:[%s166 + $0x4] sm:$0x1]
        %v236 = vld [vmem:[%s166 + $0x14] sm:$0x1]
        %v237 = vld [vmem:[%s166 + $0x24] sm:$0x1]
        %v238 = vld [vmem:[%s166 + $0x34] sm:$0x1]
        %v243 = vrot.slane %v236, 7
        %v244 = vsel %vm203, %v243, %v235
        %v245 = vrot.slane %v237, 6
        %v246 = vsel %vm206, %v245, %v244
        %v247 = vrot.slane %v238, 5
        %v248 = vsel %vm209, %v247, %v246
        %249 = vrot.lane.b32.xlu0 %v248, 49
        %v250 = vpop.permute.xlu0 %249
        %vm252 = vcmask 519560
        %253 = vst.msk [vmem:[#allocation2] sm:$0xf] %vm252, %v250
        %v254 = vld [vmem:[%s166 + $0x6] sm:$0x1]
        %v255 = vld [vmem:[%s166 + $0x16] sm:$0x1]
        %v256 = vld [vmem:[%s166 + $0x26] sm:$0x1]
        %v257 = vld [vmem:[%s166 + $0x36] sm:$0x1]
        %v262 = vrot.slane %v255, 7
        %v263 = vsel %vm203, %v262, %v254
        %v264 = vrot.slane %v256, 6
        %v265 = vsel %vm206, %v264, %v263
        %v266 = vrot.slane %v257, 5
        %v267 = vsel %vm209, %v266, %v265
        %268 = vrot.lane.b32.xlu0 %v267, 65
        %v269 = vpop.permute.xlu0 %268
        %vm271 = vcmask 650760
        %272 = vst.msk [vmem:[#allocation2] sm:$0xf] %vm271, %v269
        %v273 = vld [vmem:[%s166 + $0x8] sm:$0x1]
        %v274 = vld [vmem:[%s166 + $0x18] sm:$0x1]
        %v275 = vld [vmem:[%s166 + $0x28] sm:$0x1]
        %v276 = vld [vmem:[%s166 + $0x38] sm:$0x1]
        %v281 = vrot.slane %v274, 7
        %v282 = vsel %vm203, %v281, %v273
        %v283 = vrot.slane %v275, 6
        %v284 = vsel %vm206, %v283, %v282
        %v285 = vrot.slane %v276, 5
        %v286 = vsel %vm209, %v285, %v284
        %287 = vrot.lane.b32.xlu0 %v286, 81
        %v288 = vpop.permute.xlu0 %287
        %vm290 = vcmask 781960
        %291 = vst.msk [vmem:[#allocation2] sm:$0xf] %vm290, %v288
        %v292 = vld [vmem:[%s166 + $0xa] sm:$0x1]
        %v293 = vld [vmem:[%s166 + $0x1a] sm:$0x1]
        %v294 = vld [vmem:[%s166 + $0x2a] sm:$0x1]
        %v295 = vld [vmem:[%s166 + $0x3a] sm:$0x1]
        %v300 = vrot.slane %v293, 7
        %v301 = vsel %vm203, %v300, %v292
        %v302 = vrot.slane %v294, 6
        %v303 = vsel %vm206, %v302, %v301
        %v304 = vrot.slane %v295, 5
        %v305 = vsel %vm209, %v304, %v303
        %306 = vrot.lane.b32.xlu0 %v305, 97
        %v307 = vpop.permute.xlu0 %306
        %vm309 = vcmask 913160
        %310 = vst.msk [vmem:[#allocation2] sm:$0xf] %vm309, %v307
        %v311 = vld [vmem:[%s166 + $0xc] sm:$0x1]
        %v312 = vld [vmem:[%s166 + $0x1c] sm:$0x1]
        %v313 = vld [vmem:[%s166 + $0x2c] sm:$0x1]
        %v314 = vld [vmem:[%s166 + $0x3c] sm:$0x1]
        %v319 = vrot.slane %v312, 7
        %v320 = vsel %vm203, %v319, %v311
        %v321 = vrot.slane %v313, 6
        %v322 = vsel %vm206, %v321, %v320
        %v323 = vrot.slane %v314, 5
        %v324 = vsel %vm209, %v323, %v322
        %325 = vrot.lane.b32.xlu0 %v324, 113
        %v326 = vpop.permute.xlu0 %325
        %vm328 = vcmask 1044360
        %329 = vst.msk [vmem:[#allocation2] sm:$0xf] %vm328, %v326
        %v330 = vld [vmem:[%s166] sm:$0x1]
        %v331 = vld [vmem:[%s166 + $0x10] sm:$0x1]
        %v332 = vld [vmem:[%s166 + $0x20] sm:$0x1]
        %v333 = vld [vmem:[%s166 + $0x30] sm:$0x1]
        %v338 = vrot.slane %v331, 7
        %v339 = vsel %vm203, %v338, %v330
        %v340 = vrot.slane %v332, 6
        %v341 = vsel %vm206, %v340, %v339
        %v342 = vrot.slane %v333, 5
        %v343 = vsel %vm209, %v342, %v341
        %344 = vrot.lane.b32.xlu0 %v343, 16
        %v345 = vpop.permute.xlu0 %344
        %vm347 = vcmask 257152
        %348 = vst.msk [vmem:[#allocation2 + $0x4] sm:$0xf] %vm347, %v345
        %v349 = vld [vmem:[%s166 + $0x2] sm:$0x1]
        %v350 = vld [vmem:[%s166 + $0x12] sm:$0x1]
        %v351 = vld [vmem:[%s166 + $0x22] sm:$0x1]
        %v352 = vld [vmem:[%s166 + $0x32] sm:$0x1]
        %v357 = vrot.slane %v350, 7
        %v358 = vsel %vm203, %v357, %v349
        %v359 = vrot.slane %v351, 6
        %v360 = vsel %vm206, %v359, %v358
        %v361 = vrot.slane %v352, 5
        %v362 = vsel %vm209, %v361, %v360
        %363 = vrot.lane.b32.xlu0 %v362, 32
        %v364 = vpop.permute.xlu0 %363
        %vm366 = vcmask 388352
        %367 = vst.msk [vmem:[#allocation2 + $0x4] sm:$0xf] %vm366, %v364
        %v368 = vld [vmem:[%s166 + $0x4] sm:$0x1]
        %v369 = vld [vmem:[%s166 + $0x14] sm:$0x1]
        %v370 = vld [vmem:[%s166 + $0x24] sm:$0x1]
        %v371 = vld [vmem:[%s166 + $0x34] sm:$0x1]
        %v376 = vrot.slane %v369, 7
        %v377 = vsel %vm203, %v376, %v368
        %v378 = vrot.slane %v370, 6
        %v379 = vsel %vm206, %v378, %v377
        %v380 = vrot.slane %v371, 5
        %v381 = vsel %vm209, %v380, %v379
        %382 = vrot.lane.b32.xlu0 %v381, 48
        %v383 = vpop.permute.xlu0 %382
        %vm385 = vcmask 519552
        %386 = vst.msk [vmem:[#allocation2 + $0x4] sm:$0xf] %vm385, %v383
        %v387 = vld [vmem:[%s166 + $0x6] sm:$0x1]
        %v388 = vld [vmem:[%s166 + $0x16] sm:$0x1]
        %v389 = vld [vmem:[%s166 + $0x26] sm:$0x1]
        %v390 = vld [vmem:[%s166 + $0x36] sm:$0x1]
        %v395 = vrot.slane %v388, 7
        %v396 = vsel %vm203, %v395, %v387
        %v397 = vrot.slane %v389, 6
        %v398 = vsel %vm206, %v397, %v396
        %v399 = vrot.slane %v390, 5
        %v400 = vsel %vm209, %v399, %v398
        %401 = vrot.lane.b32.xlu0 %v400, 64
        %v402 = vpop.permute.xlu0 %401
        %vm404 = vcmask 650752
        %405 = vst.msk [vmem:[#allocation2 + $0x4] sm:$0xf] %vm404, %v402
        %v406 = vld [vmem:[%s166 + $0x8] sm:$0x1]
        %v407 = vld [vmem:[%s166 + $0x18] sm:$0x1]
        %v408 = vld [vmem:[%s166 + $0x28] sm:$0x1]
        %v409 = vld [vmem:[%s166 + $0x38] sm:$0x1]
        %v414 = vrot.slane %v407, 7
        %v415 = vsel %vm203, %v414, %v406
        %v416 = vrot.slane %v408, 6
        %v417 = vsel %vm206, %v416, %v415
        %v418 = vrot.slane %v409, 5
        %v419 = vsel %vm209, %v418, %v417
        %420 = vrot.lane.b32.xlu0 %v419, 80
        %v421 = vpop.permute.xlu0 %420
        %vm423 = vcmask 781952
        %424 = vst.msk [vmem:[#allocation2 + $0x4] sm:$0xf] %vm423, %v421
        %v425 = vld [vmem:[%s166 + $0xa] sm:$0x1]
        %v426 = vld [vmem:[%s166 + $0x1a] sm:$0x1]
        %v427 = vld [vmem:[%s166 + $0x2a] sm:$0x1]
        %v428 = vld [vmem:[%s166 + $0x3a] sm:$0x1]
        %v433 = vrot.slane %v426, 7
        %v434 = vsel %vm203, %v433, %v425
        %v435 = vrot.slane %v427, 6
        %v436 = vsel %vm206, %v435, %v434
        %v437 = vrot.slane %v428, 5
        %v438 = vsel %vm209, %v437, %v436
        %439 = vrot.lane.b32.xlu0 %v438, 96
        %v440 = vpop.permute.xlu0 %439
        %vm442 = vcmask 913152
        %443 = vst.msk [vmem:[#allocation2 + $0x4] sm:$0xf] %vm442, %v440
        %v444 = vld [vmem:[%s166 + $0xc] sm:$0x1]
        %v445 = vld [vmem:[%s166 + $0x1c] sm:$0x1]
        %v446 = vld [vmem:[%s166 + $0x2c] sm:$0x1]
        %v447 = vld [vmem:[%s166 + $0x3c] sm:$0x1]
        %v452 = vrot.slane %v445, 7
        %v453 = vsel %vm203, %v452, %v444
        %v454 = vrot.slane %v446, 6
        %v455 = vsel %vm206, %v454, %v453
        %v456 = vrot.slane %v447, 5
        %v457 = vsel %vm209, %v456, %v455
        %458 = vrot.lane.b32.xlu0 %v457, 112
        %v459 = vpop.permute.xlu0 %458
        %vm461 = vcmask 1044352
        %462 = vst.msk [vmem:[#allocation2 + $0x4] sm:$0xf] %vm461, %v459
        %v463 = vld [vmem:[%s166 + $0x1] sm:$0x1]
        %v464 = vld [vmem:[%s166 + $0x11] sm:$0x1]
        %v465 = vld [vmem:[%s166 + $0x21] sm:$0x1]
        %v466 = vld [vmem:[%s166 + $0x31] sm:$0x1]
        %v471 = vrot.slane %v464, 7
        %v472 = vsel %vm203, %v471, %v463
        %v473 = vrot.slane %v465, 6
        %v474 = vsel %vm206, %v473, %v472
        %v475 = vrot.slane %v466, 5
        %v476 = vsel %vm209, %v475, %v474
        %477 = vrot.lane.b32.xlu0 %v476, 17
        %v478 = vpop.permute.xlu0 %477
        %480 = vst.msk [vmem:[#allocation2 + $0x8] sm:$0xf] %vm214, %v478
        %v481 = vld [vmem:[%s166 + $0x3] sm:$0x1]
        %v482 = vld [vmem:[%s166 + $0x13] sm:$0x1]
        %v483 = vld [vmem:[%s166 + $0x23] sm:$0x1]
        %v484 = vld [vmem:[%s166 + $0x33] sm:$0x1]
        %v489 = vrot.slane %v482, 7
        %v490 = vsel %vm203, %v489, %v481
        %v491 = vrot.slane %v483, 6
        %v492 = vsel %vm206, %v491, %v490
        %v493 = vrot.slane %v484, 5
        %v494 = vsel %vm209, %v493, %v492
        %495 = vrot.lane.b32.xlu0 %v494, 33
        %v496 = vpop.permute.xlu0 %495
        %498 = vst.msk [vmem:[#allocation2 + $0x8] sm:$0xf] %vm233, %v496
        %v499 = vld [vmem:[%s166 + $0x5] sm:$0x1]
        %v500 = vld [vmem:[%s166 + $0x15] sm:$0x1]
        %v501 = vld [vmem:[%s166 + $0x25] sm:$0x1]
        %v502 = vld [vmem:[%s166 + $0x35] sm:$0x1]
        %v507 = vrot.slane %v500, 7
        %v508 = vsel %vm203, %v507, %v499
        %v509 = vrot.slane %v501, 6
        %v510 = vsel %vm206, %v509, %v508
        %v511 = vrot.slane %v502, 5
        %v512 = vsel %vm209, %v511, %v510
        %513 = vrot.lane.b32.xlu0 %v512, 49
        %v514 = vpop.permute.xlu0 %513
        %516 = vst.msk [vmem:[#allocation2 + $0x8] sm:$0xf] %vm252, %v514
        %v517 = vld [vmem:[%s166 + $0x7] sm:$0x1]
        %v518 = vld [vmem:[%s166 + $0x17] sm:$0x1]
        %v519 = vld [vmem:[%s166 + $0x27] sm:$0x1]
        %v520 = vld [vmem:[%s166 + $0x37] sm:$0x1]
        %v525 = vrot.slane %v518, 7
        %v526 = vsel %vm203, %v525, %v517
        %v527 = vrot.slane %v519, 6
        %v528 = vsel %vm206, %v527, %v526
        %v529 = vrot.slane %v520, 5
        %v530 = vsel %vm209, %v529, %v528
        %531 = vrot.lane.b32.xlu0 %v530, 65
        %v532 = vpop.permute.xlu0 %531
        %534 = vst.msk [vmem:[#allocation2 + $0x8] sm:$0xf] %vm271, %v532
        %v535 = vld [vmem:[%s166 + $0x9] sm:$0x1]
        %v536 = vld [vmem:[%s166 + $0x19] sm:$0x1]
        %v537 = vld [vmem:[%s166 + $0x29] sm:$0x1]
        %v538 = vld [vmem:[%s166 + $0x39] sm:$0x1]
        %v543 = vrot.slane %v536, 7
        %v544 = vsel %vm203, %v543, %v535
        %v545 = vrot.slane %v537, 6
        %v546 = vsel %vm206, %v545, %v544
        %v547 = vrot.slane %v538, 5
        %v548 = vsel %vm209, %v547, %v546
        %549 = vrot.lane.b32.xlu0 %v548, 81
        %v550 = vpop.permute.xlu0 %549
        %552 = vst.msk [vmem:[#allocation2 + $0x8] sm:$0xf] %vm290, %v550
        %v553 = vld [vmem:[%s166 + $0xb] sm:$0x1]
        %v554 = vld [vmem:[%s166 + $0x1b] sm:$0x1]
        %v555 = vld [vmem:[%s166 + $0x2b] sm:$0x1]
        %v556 = vld [vmem:[%s166 + $0x3b] sm:$0x1]
        %v561 = vrot.slane %v554, 7
        %v562 = vsel %vm203, %v561, %v553
        %v563 = vrot.slane %v555, 6
        %v564 = vsel %vm206, %v563, %v562
        %v565 = vrot.slane %v556, 5
        %v566 = vsel %vm209, %v565, %v564
        %567 = vrot.lane.b32.xlu0 %v566, 97
        %v568 = vpop.permute.xlu0 %567
        %570 = vst.msk [vmem:[#allocation2 + $0x8] sm:$0xf] %vm309, %v568
        %v571 = vld [vmem:[%s166 + $0xd] sm:$0x1]
        %v572 = vld [vmem:[%s166 + $0x1d] sm:$0x1]
        %v573 = vld [vmem:[%s166 + $0x2d] sm:$0x1]
        %v574 = vld [vmem:[%s166 + $0x3d] sm:$0x1]
        %v579 = vrot.slane %v572, 7
        %v580 = vsel %vm203, %v579, %v571
        %v581 = vrot.slane %v573, 6
        %v582 = vsel %vm206, %v581, %v580
        %v583 = vrot.slane %v574, 5
        %v584 = vsel %vm209, %v583, %v582
        %585 = vrot.lane.b32.xlu0 %v584, 113
        %v586 = vpop.permute.xlu0 %585
        %588 = vst.msk [vmem:[#allocation2 + $0x8] sm:$0xf] %vm328, %v586
        %v589 = vld [vmem:[%s166 + $0x1] sm:$0x1]
        %v590 = vld [vmem:[%s166 + $0x11] sm:$0x1]
        %v591 = vld [vmem:[%s166 + $0x21] sm:$0x1]
        %v592 = vld [vmem:[%s166 + $0x31] sm:$0x1]
        %v597 = vrot.slane %v590, 7
        %v598 = vsel %vm203, %v597, %v589
        %v599 = vrot.slane %v591, 6
        %v600 = vsel %vm206, %v599, %v598
        %v601 = vrot.slane %v592, 5
        %v602 = vsel %vm209, %v601, %v600
        %603 = vrot.lane.b32.xlu0 %v602, 16
        %v604 = vpop.permute.xlu0 %603
        %606 = vst.msk [vmem:[#allocation2 + $0xc] sm:$0xf] %vm347, %v604
        %v607 = vld [vmem:[%s166 + $0x3] sm:$0x1]
        %v608 = vld [vmem:[%s166 + $0x13] sm:$0x1]
        %v609 = vld [vmem:[%s166 + $0x23] sm:$0x1]
        %v610 = vld [vmem:[%s166 + $0x33] sm:$0x1]
        %v615 = vrot.slane %v608, 7
        %v616 = vsel %vm203, %v615, %v607
        %v617 = vrot.slane %v609, 6
        %v618 = vsel %vm206, %v617, %v616
        %v619 = vrot.slane %v610, 5
        %v620 = vsel %vm209, %v619, %v618
        %621 = vrot.lane.b32.xlu0 %v620, 32
        %v622 = vpop.permute.xlu0 %621
        %624 = vst.msk [vmem:[#allocation2 + $0xc] sm:$0xf] %vm366, %v622
        %v625 = vld [vmem:[%s166 + $0x5] sm:$0x1]
        %v626 = vld [vmem:[%s166 + $0x15] sm:$0x1]
        %v627 = vld [vmem:[%s166 + $0x25] sm:$0x1]
        %v628 = vld [vmem:[%s166 + $0x35] sm:$0x1]
        %v633 = vrot.slane %v626, 7
        %v634 = vsel %vm203, %v633, %v625
        %v635 = vrot.slane %v627, 6
        %v636 = vsel %vm206, %v635, %v634
        %v637 = vrot.slane %v628, 5
        %v638 = vsel %vm209, %v637, %v636
        %639 = vrot.lane.b32.xlu0 %v638, 48
        %v640 = vpop.permute.xlu0 %639
        %642 = vst.msk [vmem:[#allocation2 + $0xc] sm:$0xf] %vm385, %v640
        %v643 = vld [vmem:[%s166 + $0x7] sm:$0x1]
        %v644 = vld [vmem:[%s166 + $0x17] sm:$0x1]
        %v645 = vld [vmem:[%s166 + $0x27] sm:$0x1]
        %v646 = vld [vmem:[%s166 + $0x37] sm:$0x1]
        %v651 = vrot.slane %v644, 7
        %v652 = vsel %vm203, %v651, %v643
        %v653 = vrot.slane %v645, 6
        %v654 = vsel %vm206, %v653, %v652
        %v655 = vrot.slane %v646, 5
        %v656 = vsel %vm209, %v655, %v654
        %657 = vrot.lane.b32.xlu0 %v656, 64
        %v658 = vpop.permute.xlu0 %657
        %660 = vst.msk [vmem:[#allocation2 + $0xc] sm:$0xf] %vm404, %v658
        %v661 = vld [vmem:[%s166 + $0x9] sm:$0x1]
        %v662 = vld [vmem:[%s166 + $0x19] sm:$0x1]
        %v663 = vld [vmem:[%s166 + $0x29] sm:$0x1]
        %v664 = vld [vmem:[%s166 + $0x39] sm:$0x1]
        %v669 = vrot.slane %v662, 7
        %v670 = vsel %vm203, %v669, %v661
        %v671 = vrot.slane %v663, 6
        %v672 = vsel %vm206, %v671, %v670
        %v673 = vrot.slane %v664, 5
        %v674 = vsel %vm209, %v673, %v672
        %675 = vrot.lane.b32.xlu0 %v674, 80
        %v676 = vpop.permute.xlu0 %675
        %678 = vst.msk [vmem:[#allocation2 + $0xc] sm:$0xf] %vm423, %v676
        %v679 = vld [vmem:[%s166 + $0xb] sm:$0x1]
        %v680 = vld [vmem:[%s166 + $0x1b] sm:$0x1]
        %v681 = vld [vmem:[%s166 + $0x2b] sm:$0x1]
        %v682 = vld [vmem:[%s166 + $0x3b] sm:$0x1]
        %v687 = vrot.slane %v680, 7
        %v688 = vsel %vm203, %v687, %v679
        %v689 = vrot.slane %v681, 6
        %v690 = vsel %vm206, %v689, %v688
        %v691 = vrot.slane %v682, 5
        %v692 = vsel %vm209, %v691, %v690
        %693 = vrot.lane.b32.xlu0 %v692, 96
        %v694 = vpop.permute.xlu0 %693
        %696 = vst.msk [vmem:[#allocation2 + $0xc] sm:$0xf] %vm442, %v694
        %v697 = vld [vmem:[%s166 + $0xd] sm:$0x1]
        %v698 = vld [vmem:[%s166 + $0x1d] sm:$0x1]
        %v699 = vld [vmem:[%s166 + $0x2d] sm:$0x1]
        %v700 = vld [vmem:[%s166 + $0x3d] sm:$0x1]
        %v705 = vrot.slane %v698, 7
        %v706 = vsel %vm203, %v705, %v697
        %v707 = vrot.slane %v699, 6
        %v708 = vsel %vm206, %v707, %v706
        %v709 = vrot.slane %v700, 5
        %v710 = vsel %vm209, %v709, %v708
        %711 = vrot.lane.b32.xlu0 %v710, 112
        %v712 = vpop.permute.xlu0 %711
        %714 = vst.msk [vmem:[#allocation2 + $0xc] sm:$0xf] %vm461, %v712
        %v715 = vld [vmem:[%s166] sm:$0x1]
        %v716 = vld [vmem:[%s166 + $0x10] sm:$0x1]
        %v717 = vld [vmem:[%s166 + $0x20] sm:$0x1]
        %v718 = vld [vmem:[%s166 + $0x30] sm:$0x1]
        %v723 = vrot.slane %v716, 7
        %v724 = vsel %vm203, %v723, %v715
        %v725 = vrot.slane %v717, 6
        %v726 = vsel %vm206, %v725, %v724
        %v727 = vrot.slane %v718, 5
        %v728 = vsel %vm209, %v727, %v726
        %729 = vrot.lane.b32.xlu0 %v728, 1
        %v730 = vpop.permute.xlu0 %729
        %vm732 = vcmask 125960
        %733 = vst.msk [vmem:[#allocation2 + $0x10] sm:$0xf] %vm732, %v730
        %v734 = vld [vmem:[%s166 + $0x2] sm:$0x1]
        %v735 = vld [vmem:[%s166 + $0x12] sm:$0x1]
        %v736 = vld [vmem:[%s166 + $0x22] sm:$0x1]
        %v737 = vld [vmem:[%s166 + $0x32] sm:$0x1]
        %v742 = vrot.slane %v735, 7
        %v743 = vsel %vm203, %v742, %v734
        %v744 = vrot.slane %v736, 6
        %v745 = vsel %vm206, %v744, %v743
        %v746 = vrot.slane %v737, 5
        %v747 = vsel %vm209, %v746, %v745
        %748 = vrot.lane.b32.xlu0 %v747, 17
        %v749 = vpop.permute.xlu0 %748
        %751 = vst.msk [vmem:[#allocation2 + $0x10] sm:$0xf] %vm214, %v749
        %v752 = vld [vmem:[%s166 + $0x4] sm:$0x1]
        %v753 = vld [vmem:[%s166 + $0x14] sm:$0x1]
        %v754 = vld [vmem:[%s166 + $0x24] sm:$0x1]
        %v755 = vld [vmem:[%s166 + $0x34] sm:$0x1]
        %v760 = vrot.slane %v753, 7
        %v761 = vsel %vm203, %v760, %v752
        %v762 = vrot.slane %v754, 6
        %v763 = vsel %vm206, %v762, %v761
        %v764 = vrot.slane %v755, 5
        %v765 = vsel %vm209, %v764, %v763
        %766 = vrot.lane.b32.xlu0 %v765, 33
        %v767 = vpop.permute.xlu0 %766
        %769 = vst.msk [vmem:[#allocation2 + $0x10] sm:$0xf] %vm233, %v767
        %v770 = vld [vmem:[%s166 + $0x6] sm:$0x1]
        %v771 = vld [vmem:[%s166 + $0x16] sm:$0x1]
        %v772 = vld [vmem:[%s166 + $0x26] sm:$0x1]
        %v773 = vld [vmem:[%s166 + $0x36] sm:$0x1]
        %v778 = vrot.slane %v771, 7
        %v779 = vsel %vm203, %v778, %v770
        %v780 = vrot.slane %v772, 6
        %v781 = vsel %vm206, %v780, %v779
        %v782 = vrot.slane %v773, 5
        %v783 = vsel %vm209, %v782, %v781
        %784 = vrot.lane.b32.xlu0 %v783, 49
        %v785 = vpop.permute.xlu0 %784
        %787 = vst.msk [vmem:[#allocation2 + $0x10] sm:$0xf] %vm252, %v785
        %v788 = vld [vmem:[%s166 + $0x8] sm:$0x1]
        %v789 = vld [vmem:[%s166 + $0x18] sm:$0x1]
        %v790 = vld [vmem:[%s166 + $0x28] sm:$0x1]
        %v791 = vld [vmem:[%s166 + $0x38] sm:$0x1]
        %v796 = vrot.slane %v789, 7
        %v797 = vsel %vm203, %v796, %v788
        %v798 = vrot.slane %v790, 6
        %v799 = vsel %vm206, %v798, %v797
        %v800 = vrot.slane %v791, 5
        %v801 = vsel %vm209, %v800, %v799
        %802 = vrot.lane.b32.xlu0 %v801, 65
        %v803 = vpop.permute.xlu0 %802
        %805 = vst.msk [vmem:[#allocation2 + $0x10] sm:$0xf] %vm271, %v803
        %v806 = vld [vmem:[%s166 + $0xa] sm:$0x1]
        %v807 = vld [vmem:[%s166 + $0x1a] sm:$0x1]
        %v808 = vld [vmem:[%s166 + $0x2a] sm:$0x1]
        %v809 = vld [vmem:[%s166 + $0x3a] sm:$0x1]
        %v814 = vrot.slane %v807, 7
        %v815 = vsel %vm203, %v814, %v806
        %v816 = vrot.slane %v808, 6
        %v817 = vsel %vm206, %v816, %v815
        %v818 = vrot.slane %v809, 5
        %v819 = vsel %vm209, %v818, %v817
        %820 = vrot.lane.b32.xlu0 %v819, 81
        %v821 = vpop.permute.xlu0 %820
        %823 = vst.msk [vmem:[#allocation2 + $0x10] sm:$0xf] %vm290, %v821
        %v824 = vld [vmem:[%s166 + $0xc] sm:$0x1]
        %v825 = vld [vmem:[%s166 + $0x1c] sm:$0x1]
        %v826 = vld [vmem:[%s166 + $0x2c] sm:$0x1]
        %v827 = vld [vmem:[%s166 + $0x3c] sm:$0x1]
        %v832 = vrot.slane %v825, 7
        %v833 = vsel %vm203, %v832, %v824
        %v834 = vrot.slane %v826, 6
        %v835 = vsel %vm206, %v834, %v833
        %v836 = vrot.slane %v827, 5
        %v837 = vsel %vm209, %v836, %v835
        %838 = vrot.lane.b32.xlu0 %v837, 97
        %v839 = vpop.permute.xlu0 %838
        %841 = vst.msk [vmem:[#allocation2 + $0x10] sm:$0xf] %vm309, %v839
        %v842 = vld [vmem:[%s166 + $0xe] sm:$0x1]
        %v843 = vld [vmem:[%s166 + $0x1e] sm:$0x1]
        %v844 = vld [vmem:[%s166 + $0x2e] sm:$0x1]
        %v845 = vld [vmem:[%s166 + $0x3e] sm:$0x1]
        %v850 = vrot.slane %v843, 7
        %v851 = vsel %vm203, %v850, %v842
        %v852 = vrot.slane %v844, 6
        %v853 = vsel %vm206, %v852, %v851
        %v854 = vrot.slane %v845, 5
        %v855 = vsel %vm209, %v854, %v853
        %856 = vrot.lane.b32.xlu0 %v855, 113
        %v857 = vpop.permute.xlu0 %856
        %859 = vst.msk [vmem:[#allocation2 + $0x10] sm:$0xf] %vm328, %v857
        %v860 = vld [vmem:[%s166] sm:$0x1]
        %v861 = vld [vmem:[%s166 + $0x10] sm:$0x1]
        %v862 = vld [vmem:[%s166 + $0x20] sm:$0x1]
        %v863 = vld [vmem:[%s166 + $0x30] sm:$0x1]
        %v868 = vrot.slane %v861, 7
        %v869 = vsel %vm203, %v868, %v860
        %v870 = vrot.slane %v862, 6
        %v871 = vsel %vm206, %v870, %v869
        %v872 = vrot.slane %v863, 5
        %v873 = vsel %vm209, %v872, %v871
        %vm875 = vcmask 125952
        %876 = vst.msk [vmem:[#allocation2 + $0x14] sm:$0xf] %vm875, %v873
        %v877 = vld [vmem:[%s166 + $0x2] sm:$0x1]
        %v878 = vld [vmem:[%s166 + $0x12] sm:$0x1]
        %v879 = vld [vmem:[%s166 + $0x22] sm:$0x1]
        %v880 = vld [vmem:[%s166 + $0x32] sm:$0x1]
        %v885 = vrot.slane %v878, 7
        %v886 = vsel %vm203, %v885, %v877
        %v887 = vrot.slane %v879, 6
        %v888 = vsel %vm206, %v887, %v886
        %v889 = vrot.slane %v880, 5
        %v890 = vsel %vm209, %v889, %v888
        %891 = vrot.lane.b32.xlu0 %v890, 16
        %v892 = vpop.permute.xlu0 %891
        %894 = vst.msk [vmem:[#allocation2 + $0x14] sm:$0xf] %vm347, %v892
        %v895 = vld [vmem:[%s166 + $0x4] sm:$0x1]
        %v896 = vld [vmem:[%s166 + $0x14] sm:$0x1]
        %v897 = vld [vmem:[%s166 + $0x24] sm:$0x1]
        %v898 = vld [vmem:[%s166 + $0x34] sm:$0x1]
        %v903 = vrot.slane %v896, 7
        %v904 = vsel %vm203, %v903, %v895
        %v905 = vrot.slane %v897, 6
        %v906 = vsel %vm206, %v905, %v904
        %v907 = vrot.slane %v898, 5
        %v908 = vsel %vm209, %v907, %v906
        %909 = vrot.lane.b32.xlu0 %v908, 32
        %v910 = vpop.permute.xlu0 %909
        %912 = vst.msk [vmem:[#allocation2 + $0x14] sm:$0xf] %vm366, %v910
        %v913 = vld [vmem:[%s166 + $0x6] sm:$0x1]
        %v914 = vld [vmem:[%s166 + $0x16] sm:$0x1]
        %v915 = vld [vmem:[%s166 + $0x26] sm:$0x1]
        %v916 = vld [vmem:[%s166 + $0x36] sm:$0x1]
        %v921 = vrot.slane %v914, 7
        %v922 = vsel %vm203, %v921, %v913
        %v923 = vrot.slane %v915, 6
        %v924 = vsel %vm206, %v923, %v922
        %v925 = vrot.slane %v916, 5
        %v926 = vsel %vm209, %v925, %v924
        %927 = vrot.lane.b32.xlu0 %v926, 48
        %v928 = vpop.permute.xlu0 %927
        %930 = vst.msk [vmem:[#allocation2 + $0x14] sm:$0xf] %vm385, %v928
        %v931 = vld [vmem:[%s166 + $0x8] sm:$0x1]
        %v932 = vld [vmem:[%s166 + $0x18] sm:$0x1]
        %v933 = vld [vmem:[%s166 + $0x28] sm:$0x1]
        %v934 = vld [vmem:[%s166 + $0x38] sm:$0x1]
        %v939 = vrot.slane %v932, 7
        %v940 = vsel %vm203, %v939, %v931
        %v941 = vrot.slane %v933, 6
        %v942 = vsel %vm206, %v941, %v940
        %v943 = vrot.slane %v934, 5
        %v944 = vsel %vm209, %v943, %v942
        %945 = vrot.lane.b32.xlu0 %v944, 64
        %v946 = vpop.permute.xlu0 %945
        %948 = vst.msk [vmem:[#allocation2 + $0x14] sm:$0xf] %vm404, %v946
        %v949 = vld [vmem:[%s166 + $0xa] sm:$0x1]
        %v950 = vld [vmem:[%s166 + $0x1a] sm:$0x1]
        %v951 = vld [vmem:[%s166 + $0x2a] sm:$0x1]
        %v952 = vld [vmem:[%s166 + $0x3a] sm:$0x1]
        %v957 = vrot.slane %v950, 7
        %v958 = vsel %vm203, %v957, %v949
        %v959 = vrot.slane %v951, 6
        %v960 = vsel %vm206, %v959, %v958
        %v961 = vrot.slane %v952, 5
        %v962 = vsel %vm209, %v961, %v960
        %963 = vrot.lane.b32.xlu0 %v962, 80
        %v964 = vpop.permute.xlu0 %963
        %966 = vst.msk [vmem:[#allocation2 + $0x14] sm:$0xf] %vm423, %v964
        %v967 = vld [vmem:[%s166 + $0xc] sm:$0x1]
        %v968 = vld [vmem:[%s166 + $0x1c] sm:$0x1]
        %v969 = vld [vmem:[%s166 + $0x2c] sm:$0x1]
        %v970 = vld [vmem:[%s166 + $0x3c] sm:$0x1]
        %v975 = vrot.slane %v968, 7
        %v976 = vsel %vm203, %v975, %v967
        %v977 = vrot.slane %v969, 6
        %v978 = vsel %vm206, %v977, %v976
        %v979 = vrot.slane %v970, 5
        %v980 = vsel %vm209, %v979, %v978
        %981 = vrot.lane.b32.xlu0 %v980, 96
        %v982 = vpop.permute.xlu0 %981
        %984 = vst.msk [vmem:[#allocation2 + $0x14] sm:$0xf] %vm442, %v982
        %v985 = vld [vmem:[%s166 + $0xe] sm:$0x1]
        %v986 = vld [vmem:[%s166 + $0x1e] sm:$0x1]
        %v987 = vld [vmem:[%s166 + $0x2e] sm:$0x1]
        %v988 = vld [vmem:[%s166 + $0x3e] sm:$0x1]
        %v993 = vrot.slane %v986, 7
        %v994 = vsel %vm203, %v993, %v985
        %v995 = vrot.slane %v987, 6
        %v996 = vsel %vm206, %v995, %v994
        %v997 = vrot.slane %v988, 5
        %v998 = vsel %vm209, %v997, %v996
        %999 = vrot.lane.b32.xlu0 %v998, 112
        %v1000 = vpop.permute.xlu0 %999
        %1002 = vst.msk [vmem:[#allocation2 + $0x14] sm:$0xf] %vm461, %v1000
        %v1003 = vld [vmem:[%s166 + $0x1] sm:$0x1]
        %v1004 = vld [vmem:[%s166 + $0x11] sm:$0x1]
        %v1005 = vld [vmem:[%s166 + $0x21] sm:$0x1]
        %v1006 = vld [vmem:[%s166 + $0x31] sm:$0x1]
        %v1011 = vrot.slane %v1004, 7
        %v1012 = vsel %vm203, %v1011, %v1003
        %v1013 = vrot.slane %v1005, 6
        %v1014 = vsel %vm206, %v1013, %v1012
        %v1015 = vrot.slane %v1006, 5
        %v1016 = vsel %vm209, %v1015, %v1014
        %1017 = vrot.lane.b32.xlu0 %v1016, 1
        %v1018 = vpop.permute.xlu0 %1017
        %1020 = vst.msk [vmem:[#allocation2 + $0x18] sm:$0xf] %vm732, %v1018
        %v1021 = vld [vmem:[%s166 + $0x3] sm:$0x1]
        %v1022 = vld [vmem:[%s166 + $0x13] sm:$0x1]
        %v1023 = vld [vmem:[%s166 + $0x23] sm:$0x1]
        %v1024 = vld [vmem:[%s166 + $0x33] sm:$0x1]
        %v1029 = vrot.slane %v1022, 7
        %v1030 = vsel %vm203, %v1029, %v1021
        %v1031 = vrot.slane %v1023, 6
        %v1032 = vsel %vm206, %v1031, %v1030
        %v1033 = vrot.slane %v1024, 5
        %v1034 = vsel %vm209, %v1033, %v1032
        %1035 = vrot.lane.b32.xlu0 %v1034, 17
        %v1036 = vpop.permute.xlu0 %1035
        %1038 = vst.msk [vmem:[#allocation2 + $0x18] sm:$0xf] %vm214, %v1036
        %v1039 = vld [vmem:[%s166 + $0x5] sm:$0x1]
        %v1040 = vld [vmem:[%s166 + $0x15] sm:$0x1]
        %v1041 = vld [vmem:[%s166 + $0x25] sm:$0x1]
        %v1042 = vld [vmem:[%s166 + $0x35] sm:$0x1]
        %v1047 = vrot.slane %v1040, 7
        %v1048 = vsel %vm203, %v1047, %v1039
        %v1049 = vrot.slane %v1041, 6
        %v1050 = vsel %vm206, %v1049, %v1048
        %v1051 = vrot.slane %v1042, 5
        %v1052 = vsel %vm209, %v1051, %v1050
        %1053 = vrot.lane.b32.xlu0 %v1052, 33
        %v1054 = vpop.permute.xlu0 %1053
        %1056 = vst.msk [vmem:[#allocation2 + $0x18] sm:$0xf] %vm233, %v1054
        %v1057 = vld [vmem:[%s166 + $0x7] sm:$0x1]
        %v1058 = vld [vmem:[%s166 + $0x17] sm:$0x1]
        %v1059 = vld [vmem:[%s166 + $0x27] sm:$0x1]
        %v1060 = vld [vmem:[%s166 + $0x37] sm:$0x1]
        %v1065 = vrot.slane %v1058, 7
        %v1066 = vsel %vm203, %v1065, %v1057
        %v1067 = vrot.slane %v1059, 6
        %v1068 = vsel %vm206, %v1067, %v1066
        %v1069 = vrot.slane %v1060, 5
        %v1070 = vsel %vm209, %v1069, %v1068
        %1071 = vrot.lane.b32.xlu0 %v1070, 49
        %v1072 = vpop.permute.xlu0 %1071
        %1074 = vst.msk [vmem:[#allocation2 + $0x18] sm:$0xf] %vm252, %v1072
        %v1075 = vld [vmem:[%s166 + $0x9] sm:$0x1]
        %v1076 = vld [vmem:[%s166 + $0x19] sm:$0x1]
        %v1077 = vld [vmem:[%s166 + $0x29] sm:$0x1]
        %v1078 = vld [vmem:[%s166 + $0x39] sm:$0x1]
        %v1083 = vrot.slane %v1076, 7
        %v1084 = vsel %vm203, %v1083, %v1075
        %v1085 = vrot.slane %v1077, 6
        %v1086 = vsel %vm206, %v1085, %v1084
        %v1087 = vrot.slane %v1078, 5
        %v1088 = vsel %vm209, %v1087, %v1086
        %1089 = vrot.lane.b32.xlu0 %v1088, 65
        %v1090 = vpop.permute.xlu0 %1089
        %1092 = vst.msk [vmem:[#allocation2 + $0x18] sm:$0xf] %vm271, %v1090
        %v1093 = vld [vmem:[%s166 + $0xb] sm:$0x1]
        %v1094 = vld [vmem:[%s166 + $0x1b] sm:$0x1]
        %v1095 = vld [vmem:[%s166 + $0x2b] sm:$0x1]
        %v1096 = vld [vmem:[%s166 + $0x3b] sm:$0x1]
        %v1101 = vrot.slane %v1094, 7
        %v1102 = vsel %vm203, %v1101, %v1093
        %v1103 = vrot.slane %v1095, 6
        %v1104 = vsel %vm206, %v1103, %v1102
        %v1105 = vrot.slane %v1096, 5
        %v1106 = vsel %vm209, %v1105, %v1104
        %1107 = vrot.lane.b32.xlu0 %v1106, 81
        %v1108 = vpop.permute.xlu0 %1107
        %1110 = vst.msk [vmem:[#allocation2 + $0x18] sm:$0xf] %vm290, %v1108
        %v1111 = vld [vmem:[%s166 + $0xd] sm:$0x1]
        %v1112 = vld [vmem:[%s166 + $0x1d] sm:$0x1]
        %v1113 = vld [vmem:[%s166 + $0x2d] sm:$0x1]
        %v1114 = vld [vmem:[%s166 + $0x3d] sm:$0x1]
        %v1119 = vrot.slane %v1112, 7
        %v1120 = vsel %vm203, %v1119, %v1111
        %v1121 = vrot.slane %v1113, 6
        %v1122 = vsel %vm206, %v1121, %v1120
        %v1123 = vrot.slane %v1114, 5
        %v1124 = vsel %vm209, %v1123, %v1122
        %1125 = vrot.lane.b32.xlu0 %v1124, 97
        %v1126 = vpop.permute.xlu0 %1125
        %1128 = vst.msk [vmem:[#allocation2 + $0x18] sm:$0xf] %vm309, %v1126
        %v1129 = vld [vmem:[%s166 + $0xf] sm:$0x1]
        %v1130 = vld [vmem:[%s166 + $0x1f] sm:$0x1]
        %v1131 = vld [vmem:[%s166 + $0x2f] sm:$0x1]
        %v1132 = vld [vmem:[%s166 + $0x3f] sm:$0x1]
        %v1137 = vrot.slane %v1130, 7
        %v1138 = vsel %vm203, %v1137, %v1129
        %v1139 = vrot.slane %v1131, 6
        %v1140 = vsel %vm206, %v1139, %v1138
        %v1141 = vrot.slane %v1132, 5
        %v1142 = vsel %vm209, %v1141, %v1140
        %1143 = vrot.lane.b32.xlu0 %v1142, 113
        %v1144 = vpop.permute.xlu0 %1143
        %1146 = vst.msk [vmem:[#allocation2 + $0x18] sm:$0xf] %vm328, %v1144
        %v1147 = vld [vmem:[%s166 + $0x1] sm:$0x1]
        %v1148 = vld [vmem:[%s166 + $0x11] sm:$0x1]
        %v1149 = vld [vmem:[%s166 + $0x21] sm:$0x1]
        %v1150 = vld [vmem:[%s166 + $0x31] sm:$0x1]
        %v1155 = vrot.slane %v1148, 7
        %v1156 = vsel %vm203, %v1155, %v1147
        %v1157 = vrot.slane %v1149, 6
        %v1158 = vsel %vm206, %v1157, %v1156
        %v1159 = vrot.slane %v1150, 5
        %v1160 = vsel %vm209, %v1159, %v1158
        %1162 = vst.msk [vmem:[#allocation2 + $0x1c] sm:$0xf] %vm875, %v1160
        %v1163 = vld [vmem:[%s166 + $0x3] sm:$0x1]
        %v1164 = vld [vmem:[%s166 + $0x13] sm:$0x1]
        %v1165 = vld [vmem:[%s166 + $0x23] sm:$0x1]
        %v1166 = vld [vmem:[%s166 + $0x33] sm:$0x1]
        %v1171 = vrot.slane %v1164, 7
        %v1172 = vsel %vm203, %v1171, %v1163
        %v1173 = vrot.slane %v1165, 6
        %v1174 = vsel %vm206, %v1173, %v1172
        %v1175 = vrot.slane %v1166, 5
        %v1176 = vsel %vm209, %v1175, %v1174
        %1177 = vrot.lane.b32.xlu0 %v1176, 16
        %v1178 = vpop.permute.xlu0 %1177
        %1180 = vst.msk [vmem:[#allocation2 + $0x1c] sm:$0xf] %vm347, %v1178
        %v1181 = vld [vmem:[%s166 + $0x5] sm:$0x1]
        %v1182 = vld [vmem:[%s166 + $0x15] sm:$0x1]
        %v1183 = vld [vmem:[%s166 + $0x25] sm:$0x1]
        %v1184 = vld [vmem:[%s166 + $0x35] sm:$0x1]
        %v1189 = vrot.slane %v1182, 7
        %v1190 = vsel %vm203, %v1189, %v1181
        %v1191 = vrot.slane %v1183, 6
        %v1192 = vsel %vm206, %v1191, %v1190
        %v1193 = vrot.slane %v1184, 5
        %v1194 = vsel %vm209, %v1193, %v1192
        %1195 = vrot.lane.b32.xlu0 %v1194, 32
        %v1196 = vpop.permute.xlu0 %1195
        %1198 = vst.msk [vmem:[#allocation2 + $0x1c] sm:$0xf] %vm366, %v1196
        %v1199 = vld [vmem:[%s166 + $0x7] sm:$0x1]
        %v1200 = vld [vmem:[%s166 + $0x17] sm:$0x1]
        %v1201 = vld [vmem:[%s166 + $0x27] sm:$0x1]
        %v1202 = vld [vmem:[%s166 + $0x37] sm:$0x1]
        %v1207 = vrot.slane %v1200, 7
        %v1208 = vsel %vm203, %v1207, %v1199
        %v1209 = vrot.slane %v1201, 6
        %v1210 = vsel %vm206, %v1209, %v1208
        %v1211 = vrot.slane %v1202, 5
        %v1212 = vsel %vm209, %v1211, %v1210
        %1213 = vrot.lane.b32.xlu0 %v1212, 48
        %v1214 = vpop.permute.xlu0 %1213
        %1216 = vst.msk [vmem:[#allocation2 + $0x1c] sm:$0xf] %vm385, %v1214
        %v1217 = vld [vmem:[%s166 + $0x9] sm:$0x1]
        %v1218 = vld [vmem:[%s166 + $0x19] sm:$0x1]
        %v1219 = vld [vmem:[%s166 + $0x29] sm:$0x1]
        %v1220 = vld [vmem:[%s166 + $0x39] sm:$0x1]
        %v1225 = vrot.slane %v1218, 7
        %v1226 = vsel %vm203, %v1225, %v1217
        %v1227 = vrot.slane %v1219, 6
        %v1228 = vsel %vm206, %v1227, %v1226
        %v1229 = vrot.slane %v1220, 5
        %v1230 = vsel %vm209, %v1229, %v1228
        %1231 = vrot.lane.b32.xlu0 %v1230, 64
        %v1232 = vpop.permute.xlu0 %1231
        %1234 = vst.msk [vmem:[#allocation2 + $0x1c] sm:$0xf] %vm404, %v1232
        %v1235 = vld [vmem:[%s166 + $0xb] sm:$0x1]
        %v1236 = vld [vmem:[%s166 + $0x1b] sm:$0x1]
        %v1237 = vld [vmem:[%s166 + $0x2b] sm:$0x1]
        %v1238 = vld [vmem:[%s166 + $0x3b] sm:$0x1]
        %v1243 = vrot.slane %v1236, 7
        %v1244 = vsel %vm203, %v1243, %v1235
        %v1245 = vrot.slane %v1237, 6
        %v1246 = vsel %vm206, %v1245, %v1244
        %v1247 = vrot.slane %v1238, 5
        %v1248 = vsel %vm209, %v1247, %v1246
        %1249 = vrot.lane.b32.xlu0 %v1248, 80
        %v1250 = vpop.permute.xlu0 %1249
        %1252 = vst.msk [vmem:[#allocation2 + $0x1c] sm:$0xf] %vm423, %v1250
        %v1253 = vld [vmem:[%s166 + $0xd] sm:$0x1]
        %v1254 = vld [vmem:[%s166 + $0x1d] sm:$0x1]
        %v1255 = vld [vmem:[%s166 + $0x2d] sm:$0x1]
        %v1256 = vld [vmem:[%s166 + $0x3d] sm:$0x1]
        %v1261 = vrot.slane %v1254, 7
        %v1262 = vsel %vm203, %v1261, %v1253
        %v1263 = vrot.slane %v1255, 6
        %v1264 = vsel %vm206, %v1263, %v1262
        %v1265 = vrot.slane %v1256, 5
        %v1266 = vsel %vm209, %v1265, %v1264
        %1267 = vrot.lane.b32.xlu0 %v1266, 96
        %v1268 = vpop.permute.xlu0 %1267
        %1270 = vst.msk [vmem:[#allocation2 + $0x1c] sm:$0xf] %vm442, %v1268
        %v1271 = vld [vmem:[%s166 + $0xf] sm:$0x1]
        %v1272 = vld [vmem:[%s166 + $0x1f] sm:$0x1]
        %v1273 = vld [vmem:[%s166 + $0x2f] sm:$0x1]
        %v1274 = vld [vmem:[%s166 + $0x3f] sm:$0x1]
        %v1279 = vrot.slane %v1272, 7
        %v1280 = vsel %vm203, %v1279, %v1271
        %v1281 = vrot.slane %v1273, 6
        %v1282 = vsel %vm206, %v1281, %v1280
        %v1283 = vrot.slane %v1274, 5
        %v1284 = vsel %vm209, %v1283, %v1282
        %1285 = vrot.lane.b32.xlu0 %v1284, 112
        %v1286 = vpop.permute.xlu0 %1285
        %1288 = vst.msk [vmem:[#allocation2 + $0x1c] sm:$0xf] %vm461, %v1286
        %v1289 = vld [vmem:[%s166 + $0x2] sm:$0x1]
        %v1290 = vld [vmem:[%s166 + $0x12] sm:$0x1]
        %v1291 = vld [vmem:[%s166 + $0x22] sm:$0x1]
        %v1292 = vld [vmem:[%s166 + $0x32] sm:$0x1]
        %v1297 = vrot.slane %v1290, 7
        %v1298 = vsel %vm203, %v1297, %v1289
        %v1299 = vrot.slane %v1291, 6
        %v1300 = vsel %vm206, %v1299, %v1298
        %v1301 = vrot.slane %v1292, 5
        %v1302 = vsel %vm209, %v1301, %v1300
        %1303 = vrot.lane.b32.xlu0 %v1302, 1
        %v1304 = vpop.permute.xlu0 %1303
        %1306 = vst.msk [vmem:[#allocation2 + $0x20] sm:$0xf] %vm732, %v1304
        %v1307 = vld [vmem:[%s166 + $0x4] sm:$0x1]
        %v1308 = vld [vmem:[%s166 + $0x14] sm:$0x1]
        %v1309 = vld [vmem:[%s166 + $0x24] sm:$0x1]
        %v1310 = vld [vmem:[%s166 + $0x34] sm:$0x1]
        %v1315 = vrot.slane %v1308, 7
        %v1316 = vsel %vm203, %v1315, %v1307
        %v1317 = vrot.slane %v1309, 6
        %v1318 = vsel %vm206, %v1317, %v1316
        %v1319 = vrot.slane %v1310, 5
        %v1320 = vsel %vm209, %v1319, %v1318
        %1321 = vrot.lane.b32.xlu0 %v1320, 17
        %v1322 = vpop.permute.xlu0 %1321
        %1324 = vst.msk [vmem:[#allocation2 + $0x20] sm:$0xf] %vm214, %v1322
        %v1325 = vld [vmem:[%s166 + $0x6] sm:$0x1]
        %v1326 = vld [vmem:[%s166 + $0x16] sm:$0x1]
        %v1327 = vld [vmem:[%s166 + $0x26] sm:$0x1]
        %v1328 = vld [vmem:[%s166 + $0x36] sm:$0x1]
        %v1333 = vrot.slane %v1326, 7
        %v1334 = vsel %vm203, %v1333, %v1325
        %v1335 = vrot.slane %v1327, 6
        %v1336 = vsel %vm206, %v1335, %v1334
        %v1337 = vrot.slane %v1328, 5
        %v1338 = vsel %vm209, %v1337, %v1336
        %1339 = vrot.lane.b32.xlu0 %v1338, 33
        %v1340 = vpop.permute.xlu0 %1339
        %1342 = vst.msk [vmem:[#allocation2 + $0x20] sm:$0xf] %vm233, %v1340
        %v1343 = vld [vmem:[%s166 + $0x8] sm:$0x1]
        %v1344 = vld [vmem:[%s166 + $0x18] sm:$0x1]
        %v1345 = vld [vmem:[%s166 + $0x28] sm:$0x1]
        %v1346 = vld [vmem:[%s166 + $0x38] sm:$0x1]
        %v1351 = vrot.slane %v1344, 7
        %v1352 = vsel %vm203, %v1351, %v1343
        %v1353 = vrot.slane %v1345, 6
        %v1354 = vsel %vm206, %v1353, %v1352
        %v1355 = vrot.slane %v1346, 5
        %v1356 = vsel %vm209, %v1355, %v1354
        %1357 = vrot.lane.b32.xlu0 %v1356, 49
        %v1358 = vpop.permute.xlu0 %1357
        %1360 = vst.msk [vmem:[#allocation2 + $0x20] sm:$0xf] %vm252, %v1358
        %v1361 = vld [vmem:[%s166 + $0xa] sm:$0x1]
        %v1362 = vld [vmem:[%s166 + $0x1a] sm:$0x1]
        %v1363 = vld [vmem:[%s166 + $0x2a] sm:$0x1]
        %v1364 = vld [vmem:[%s166 + $0x3a] sm:$0x1]
        %v1369 = vrot.slane %v1362, 7
        %v1370 = vsel %vm203, %v1369, %v1361
        %v1371 = vrot.slane %v1363, 6
        %v1372 = vsel %vm206, %v1371, %v1370
        %v1373 = vrot.slane %v1364, 5
        %v1374 = vsel %vm209, %v1373, %v1372
        %1375 = vrot.lane.b32.xlu0 %v1374, 65
        %v1376 = vpop.permute.xlu0 %1375
        %1378 = vst.msk [vmem:[#allocation2 + $0x20] sm:$0xf] %vm271, %v1376
        %v1379 = vld [vmem:[%s166 + $0xc] sm:$0x1]
        %v1380 = vld [vmem:[%s166 + $0x1c] sm:$0x1]
        %v1381 = vld [vmem:[%s166 + $0x2c] sm:$0x1]
        %v1382 = vld [vmem:[%s166 + $0x3c] sm:$0x1]
        %v1387 = vrot.slane %v1380, 7
        %v1388 = vsel %vm203, %v1387, %v1379
        %v1389 = vrot.slane %v1381, 6
        %v1390 = vsel %vm206, %v1389, %v1388
        %v1391 = vrot.slane %v1382, 5
        %v1392 = vsel %vm209, %v1391, %v1390
        %1393 = vrot.lane.b32.xlu0 %v1392, 81
        %v1394 = vpop.permute.xlu0 %1393
        %1396 = vst.msk [vmem:[#allocation2 + $0x20] sm:$0xf] %vm290, %v1394
        %v1397 = vld [vmem:[%s166 + $0xe] sm:$0x1]
        %v1398 = vld [vmem:[%s166 + $0x1e] sm:$0x1]
        %v1399 = vld [vmem:[%s166 + $0x2e] sm:$0x1]
        %v1400 = vld [vmem:[%s166 + $0x3e] sm:$0x1]
        %v1405 = vrot.slane %v1398, 7
        %v1406 = vsel %vm203, %v1405, %v1397
        %v1407 = vrot.slane %v1399, 6
        %v1408 = vsel %vm206, %v1407, %v1406
        %v1409 = vrot.slane %v1400, 5
        %v1410 = vsel %vm209, %v1409, %v1408
        %1411 = vrot.lane.b32.xlu0 %v1410, 97
        %v1412 = vpop.permute.xlu0 %1411
        %1414 = vst.msk [vmem:[#allocation2 + $0x20] sm:$0xf] %vm309, %v1412
        %v1415 = vld [vmem:[%s166 + $0x2] sm:$0x1]
        %v1416 = vld [vmem:[%s166 + $0x12] sm:$0x1]
        %v1417 = vld [vmem:[%s166 + $0x22] sm:$0x1]
        %v1418 = vld [vmem:[%s166 + $0x32] sm:$0x1]
        %v1423 = vrot.slane %v1416, 7
        %v1424 = vsel %vm203, %v1423, %v1415
        %v1425 = vrot.slane %v1417, 6
        %v1426 = vsel %vm206, %v1425, %v1424
        %v1427 = vrot.slane %v1418, 5
        %v1428 = vsel %vm209, %v1427, %v1426
        %1430 = vst.msk [vmem:[#allocation2 + $0x24] sm:$0xf] %vm875, %v1428
        %v1431 = vld [vmem:[%s166 + $0x4] sm:$0x1]
        %v1432 = vld [vmem:[%s166 + $0x14] sm:$0x1]
        %v1433 = vld [vmem:[%s166 + $0x24] sm:$0x1]
        %v1434 = vld [vmem:[%s166 + $0x34] sm:$0x1]
        %v1439 = vrot.slane %v1432, 7
        %v1440 = vsel %vm203, %v1439, %v1431
        %v1441 = vrot.slane %v1433, 6
        %v1442 = vsel %vm206, %v1441, %v1440
        %v1443 = vrot.slane %v1434, 5
        %v1444 = vsel %vm209, %v1443, %v1442
        %1445 = vrot.lane.b32.xlu0 %v1444, 16
        %v1446 = vpop.permute.xlu0 %1445
        %1448 = vst.msk [vmem:[#allocation2 + $0x24] sm:$0xf] %vm347, %v1446
        %v1449 = vld [vmem:[%s166 + $0x6] sm:$0x1]
        %v1450 = vld [vmem:[%s166 + $0x16] sm:$0x1]
        %v1451 = vld [vmem:[%s166 + $0x26] sm:$0x1]
        %v1452 = vld [vmem:[%s166 + $0x36] sm:$0x1]
        %v1457 = vrot.slane %v1450, 7
        %v1458 = vsel %vm203, %v1457, %v1449
        %v1459 = vrot.slane %v1451, 6
        %v1460 = vsel %vm206, %v1459, %v1458
        %v1461 = vrot.slane %v1452, 5
        %v1462 = vsel %vm209, %v1461, %v1460
        %1463 = vrot.lane.b32.xlu0 %v1462, 32
        %v1464 = vpop.permute.xlu0 %1463
        %1466 = vst.msk [vmem:[#allocation2 + $0x24] sm:$0xf] %vm366, %v1464
        %v1467 = vld [vmem:[%s166 + $0x8] sm:$0x1]
        %v1468 = vld [vmem:[%s166 + $0x18] sm:$0x1]
        %v1469 = vld [vmem:[%s166 + $0x28] sm:$0x1]
        %v1470 = vld [vmem:[%s166 + $0x38] sm:$0x1]
        %v1475 = vrot.slane %v1468, 7
        %v1476 = vsel %vm203, %v1475, %v1467
        %v1477 = vrot.slane %v1469, 6
        %v1478 = vsel %vm206, %v1477, %v1476
        %v1479 = vrot.slane %v1470, 5
        %v1480 = vsel %vm209, %v1479, %v1478
        %1481 = vrot.lane.b32.xlu0 %v1480, 48
        %v1482 = vpop.permute.xlu0 %1481
        %1484 = vst.msk [vmem:[#allocation2 + $0x24] sm:$0xf] %vm385, %v1482
        %v1485 = vld [vmem:[%s166 + $0xa] sm:$0x1]
        %v1486 = vld [vmem:[%s166 + $0x1a] sm:$0x1]
        %v1487 = vld [vmem:[%s166 + $0x2a] sm:$0x1]
        %v1488 = vld [vmem:[%s166 + $0x3a] sm:$0x1]
        %v1493 = vrot.slane %v1486, 7
        %v1494 = vsel %vm203, %v1493, %v1485
        %v1495 = vrot.slane %v1487, 6
        %v1496 = vsel %vm206, %v1495, %v1494
        %v1497 = vrot.slane %v1488, 5
        %v1498 = vsel %vm209, %v1497, %v1496
        %1499 = vrot.lane.b32.xlu0 %v1498, 64
        %v1500 = vpop.permute.xlu0 %1499
        %1502 = vst.msk [vmem:[#allocation2 + $0x24] sm:$0xf] %vm404, %v1500
        %v1503 = vld [vmem:[%s166 + $0xc] sm:$0x1]
        %v1504 = vld [vmem:[%s166 + $0x1c] sm:$0x1]
        %v1505 = vld [vmem:[%s166 + $0x2c] sm:$0x1]
        %v1506 = vld [vmem:[%s166 + $0x3c] sm:$0x1]
        %v1511 = vrot.slane %v1504, 7
        %v1512 = vsel %vm203, %v1511, %v1503
        %v1513 = vrot.slane %v1505, 6
        %v1514 = vsel %vm206, %v1513, %v1512
        %v1515 = vrot.slane %v1506, 5
        %v1516 = vsel %vm209, %v1515, %v1514
        %1517 = vrot.lane.b32.xlu0 %v1516, 80
        %v1518 = vpop.permute.xlu0 %1517
        %1520 = vst.msk [vmem:[#allocation2 + $0x24] sm:$0xf] %vm423, %v1518
        %v1521 = vld [vmem:[%s166 + $0xe] sm:$0x1]
        %v1522 = vld [vmem:[%s166 + $0x1e] sm:$0x1]
        %v1523 = vld [vmem:[%s166 + $0x2e] sm:$0x1]
        %v1524 = vld [vmem:[%s166 + $0x3e] sm:$0x1]
        %v1529 = vrot.slane %v1522, 7
        %v1530 = vsel %vm203, %v1529, %v1521
        %v1531 = vrot.slane %v1523, 6
        %v1532 = vsel %vm206, %v1531, %v1530
        %v1533 = vrot.slane %v1524, 5
        %v1534 = vsel %vm209, %v1533, %v1532
        %1535 = vrot.lane.b32.xlu0 %v1534, 96
        %v1536 = vpop.permute.xlu0 %1535
        %1538 = vst.msk [vmem:[#allocation2 + $0x24] sm:$0xf] %vm442, %v1536
        %v1539 = vld [vmem:[%s0] sm:$0xff]
        %v1540 = vld [vmem:[#allocation2] sm:$0xff]
        %v1541 = vld [vmem:[#allocation2 + $0x8] sm:$0xff]
        %v1542 = vld [vmem:[#allocation2 + $0x10] sm:$0xff]
        %v1543 = vld [vmem:[#allocation2 + $0x18] sm:$0xff]
        %v1544 = vld [vmem:[#allocation2 + $0x20] sm:$0xff]
        %v1545 = vld [vmem:[%s1] sm:$0xff]
        %1547 = vset.pattern.permute.xlu0 0
        %1548 = vperm.xlu0 %1547, %v1545
        %v1549 = vpop.permute.xlu0 %1548
        %vm1551 = vcmask 326656
        %v1553 = vsel %vm1551, %v1539, 0
        %1555 = vmatprep.subr.mxu0 0.0
        %1556 = vmatpush1.msra.mxu0 0.0
        %1557 = vmatprep.subr.mxu0 0.0
        %1558 = vmatpush1.msra.mxu0 0.0
        %1559 = vmatprep.subr.mxu0 0.0
        %1560 = vmatpush1.msra.mxu0 0.0
        %1561 = vmatprep.subr.mxu0 0.0
        %1562 = vmatpush1.msra.mxu0 0.0
        %1563 = vmatprep.subr.mxu0 0.0
        %1564 = vmatpush1.msra.mxu0 0.0
        %1565 = vmatprep.subr.mxu0 0.0
        %1566 = vmatpush1.msra.mxu0 0.0
        %1567 = vmatprep.subr.mxu0 0.0
        %1568 = vmatpush1.msra.mxu0 0.0
        %1569 = vmatprep.subr.mxu0 0.0
        %1570 = vmatpush1.msra.mxu0 0.0
        %1571 = vmatprep.subr.mxu0 0.0
        %1572 = vmatpush1.msra.mxu0 0.0
        %1573 = vmatprep.subr.mxu0 0.0
        %1574 = vmatpush1.msra.mxu0 0.0
        %1575 = vmatprep.subr.mxu0 0.0
        %1576 = vmatpush1.msra.mxu0 0.0
        %1577 = vmatprep.subr.mxu0 0.0
        %1578 = vmatpush1.msra.mxu0 %v1544
        %1579 = vmatprep.subr.mxu0 0.0
        %1580 = vmatpush1.msra.mxu0 %v1543
        %1581 = vmatprep.subr.mxu0 0.0
        %1582 = vmatpush1.msra.mxu0 %v1542
        %1583 = vmatprep.subr.mxu0 0.0
        %1584 = vmatpush1.msra.mxu0 %v1541
        %1585 = vmatprep.subr.mxu0 0.0
        %1586 = vmatpush1.msra.mxu0 %v1540
        %1587 = vmatprep.subr.mxu0 0.0
        %1588 = vmatpush2.msra.mxu0 0.0
        %1589 = vmatprep.subr.mxu0 0.0
        %1590 = vmatpush2.msra.mxu0 0.0
        %1591 = vmatprep.subr.mxu0 0.0
        %1592 = vmatpush2.msra.mxu0 0.0
        %1593 = vmatprep.subr.mxu0 0.0
        %1594 = vmatpush2.msra.mxu0 0.0
        %1595 = vmatprep.subr.mxu0 0.0
        %1596 = vmatpush2.msra.mxu0 0.0
        %1597 = vmatprep.subr.mxu0 0.0
        %1598 = vmatpush2.msra.mxu0 0.0
        %1599 = vmatprep.subr.mxu0 0.0
        %1600 = vmatpush2.msra.mxu0 0.0
        %1601 = vmatprep.subr.mxu0 0.0
        %1602 = vmatpush2.msra.mxu0 0.0
        %1603 = vmatprep.subr.mxu0 0.0
        %1604 = vmatpush2.msra.mxu0 0.0
        %1605 = vmatprep.subr.mxu0 0.0
        %1606 = vmatpush2.msra.mxu0 0.0
        %1607 = vmatprep.subr.mxu0 0.0
        %1608 = vmatpush2.msra.mxu0 0.0
        %1609 = vmatprep.subr.mxu0 0.0
        %1610 = vmatpush2.msra.mxu0 0.0
        %1611 = vmatprep.subr.mxu0 0.0
        %1612 = vmatpush2.msra.mxu0 0.0
        %1613 = vmatprep.subr.mxu0 0.0
        %1614 = vmatpush2.msra.mxu0 0.0
        %1615 = vmatprep.subr.mxu0 0.0
        %1616 = vmatpush2.msra.mxu0 0.0
        %1617 = vmatprep.subr.mxu0 0.0
        %1618 = vmatpush2.msra.mxu0 0.0
        %1619 = vmatprep.mubr.f32.mxu0 0.0
        %1620 = vmatmul.mubr.f32.gmra.mxu0 %v1553
        %v1621 = vpop.f32.mrf.mxu0
        %v1622 = vadd.f32 %v1549, %v1621
        %v1623 = vpop.f32.mrf.mxu0
        %1624 = vdwg.mxu0
        %1625 = vst [vmem:[%s188] sm:$0xff] %v1622
        %s1626 = sand.u32 %s96, 1
        %s1627 = scalar_lea.sflag [#allocation5], %s1626
        %s1628 = sand.u32 %s96, 1
        %s1629 = smul.addr %s1628, 8
        %s1630 = scalar_lea.vmem [#allocation6], %s1629
        // Predicated region
        $region37: #{tpu_custom_call.1} parent=31 // pred_check
          %p1631 = pneg %p106
        $region38: #{tpu_custom_call.1} parent=31 // pred_check_branch
          %1633 = sbr.rel (%p1631) target = $region40
        $region39: #{tpu_custom_call.1} parent=31 // pred_region
          %s1635 = ssub.s32 128, 128
          %1636 = vsyncadd %s1627, %s1635
          %s1637 = smul.addr %s20, 128
          %s1638 = scalar_lea.hbm %s3, %s1637
          %s1640 = sshll.u32 %s1630, 4
          %s1641 = int_to_ptr.vmem [resolvable:$true] %s1640
          %1643 = dma.vmem_to_hbm [thread:$0]  %s1641, 128, %s1638, %s1627
        $region40: #{tpu_custom_call.1} parent=31 // pred_fallthru
          _
      $region32: #{tpu_custom_call.1} parent=5 // pred_fallthru
        _
      %p1644 = scmp.le.s32.totalorder 2, %s15
      // Predicated region
      $region41: #{tpu_custom_call.1} parent=5 // pred_check
        %p1645 = pneg %p1644
      $region42: #{tpu_custom_call.1} parent=5 // pred_check_branch
        %1647 = sbr.rel (%p1645) target = $region44
      $region43: #{tpu_custom_call.1} parent=5 // pred_region
        %s1648 = ssub.s32 %s15, 2
        // Predicated region
        $region45: #{tpu_custom_call.1} parent=43 // pred_check
          %p1649 = pneg %p112
        $region46: #{tpu_custom_call.1} parent=43 // pred_check_branch
          %1651 = sbr.rel (%p1649) target = $region48
        $region47: #{tpu_custom_call.1} parent=43 // pred_region
          %s1652 = sand.u32 %s97, 1
          %s1653 = scalar_lea.sflag [#allocation5], %s1652
          %s1654 = sand.u32 %s97, 1
          %s1655 = smul.addr %s1654, 8
          %s1656 = scalar_lea.vmem [#allocation6], %s1655
          %1657 = dma.done %s1653, 128
        $region48: #{tpu_custom_call.1} parent=43 // pred_fallthru
          _
      $region44: #{tpu_custom_call.1} parent=5 // pred_fallthru
        _
    $region6: #{tpu_custom_call.1} parent=1 // loop_footer
      %s19 = sadd.s32 1, %s15
    $region7: #{tpu_custom_call.1} parent=1 // loop_footer_branch
      %14 = sbr.rel target = $region3
    $region8: #{tpu_custom_call.1} parent=1 // loop_exit
      _
    %1658 = vsyncpa [#allocation4], 1
    %s1659 = scalar_lea.sflag [#allocation4], 1
    %1660 = vsyncpa %s1659, 1
    %1661 = vsyncpa [#allocation5], 1
    %s1662 = scalar_lea.sflag [#allocation5], 1
    %1663 = vsyncpa %s1662, 1

</llo_original>
